<compile_context>
chip_gen: v5e
topology: v5e:2x2
jax: 0.10.0
libtpu: 0.0.40
codegen_flags: <defaults>
</compile_context>

<pallas_src>
import functools

import jax
import jax.numpy as jnp
from jax.experimental import pallas as pl
from jax.experimental.pallas import tpu as pltpu


# --------------------------------- kernel ------------------------------------

def eegtcnet_kernel(dims,
                    x_ref, wc_ref, wsep_ref, p1_ref, p2_ref,
                    t1w1_ref, t1w2_ref, t1pw_ref, t2w1_ref, t2w2_ref,
                    clfw_ref, bias_ref, out_ref):
    C, T = dims["C"], dims["T"]
    F2, KL, KD = dims["F2"], dims["KL"], dims["KD"]
    FILT, KS, NC = dims["FILT"], dims["KS"], dims["NC"]
    BT = dims["B_TILE"]
    T1, T2 = T // 8, T // 64
    LP, RP = (KL - 1) // 2, (KL - 1) - (KL - 1) // 2       # PyTorch 'same' (even K)
    LP2, RP2 = (KD - 1) // 2, (KD - 1) - (KD - 1) // 2

    wc = wc_ref[...]          # (F2, KL*C)   fused temporal+spatial conv (BN1,BN2 folded)
    wsep = wsep_ref[...]      # (F2, KD*F2)  fused depthwise+pointwise (BN3 folded)
    p1 = p1_ref[...]          # (T,  T1)     AvgPool(1,8) matrix
    p2 = p2_ref[...]          # (T1, T2)     AvgPool(1,8) matrix
    t1w1, t1w2, t1pw = t1w1_ref[...], t1w2_ref[...], t1pw_ref[...]
    t2w1, t2w2 = t2w1_ref[...], t2w2_ref[...]
    clfw = clfw_ref[...]      # (NC, FILT)

    bias = bias_ref[...]      # (16, 8) packed bias columns
    b12 = bias[0:F2, 0:1]
    b3 = bias[0:F2, 1:2]
    t1b1 = bias[0:FILT, 2:3]
    t1b2 = bias[0:FILT, 3:4]
    t1pb = bias[0:FILT, 4:5]
    t2b1 = bias[0:FILT, 5:6]
    t2b2 = bias[0:FILT, 6:7]
    clfb = bias[0:NC, 7:8]

    def elu(v):
        return jnp.where(v > 0, v, jnp.exp(jnp.minimum(v, 0.0)) - 1.0)

    def causal_conv(h, w2d, b, dil, cin, k, tt):
        # CausalConv1d (+ folded BN): left pad (k-1)*dil, im2col stack, one matmul.
        pad = (k - 1) * dil
        hp = jnp.concatenate([jnp.zeros((cin, pad), jnp.float32), h], axis=1)
        hs = jnp.concatenate(
            [hp[:, kk * dil: kk * dil + tt] for kk in range(k)], axis=0)  # (k*cin, tt)
        return jnp.dot(w2d, hs, preferred_element_type=jnp.float32) + b

    for bi in range(BT):
        x = x_ref[bi]                                          # (C, T)

        # ---- EEGNet stages 1+2: fused temporal+spatial conv, BN1/BN2 folded
        xp = jnp.concatenate([jnp.zeros((C, LP), jnp.float32), x,
                              jnp.zeros((C, RP), jnp.float32)], axis=1)   # (C, T+KL-1)
        xs = jnp.concatenate([xp[:, k:k + T] for k in range(KL)], axis=0)  # (KL*C, T)
        h = jnp.dot(wc, xs, preferred_element_type=jnp.float32) + b12      # (F2, T)
        h = elu(h)
        h = jnp.dot(h, p1, preferred_element_type=jnp.float32)             # (F2, T1)

        # ---- separable conv (depthwise temporal + pointwise) + BN3, fused
        hp = jnp.concatenate([jnp.zeros((F2, LP2), jnp.float32), h,
                              jnp.zeros((F2, RP2), jnp.float32)], axis=1)  # (F2, T1+KD-1)
        hs = jnp.concatenate([hp[:, k:k + T1] for k in range(KD)], axis=0)  # (KD*F2, T1)
        h = jnp.dot(wsep, hs, preferred_element_type=jnp.float32) + b3      # (F2, T1)
        h = elu(h)
        h = jnp.dot(h, p2, preferred_element_type=jnp.float32)              # (F2, T2)

        # ---- TCN block 1: F2 -> FILT, dilation 1, projected residual
        res = jnp.dot(t1pw, h, preferred_element_type=jnp.float32) + t1pb
        o = jnp.maximum(causal_conv(h, t1w1, t1b1, 1, F2, KS, T2), 0.0)
        o = jnp.maximum(causal_conv(o, t1w2, t1b2, 1, FILT, KS, T2), 0.0)
        h = jnp.maximum(o + res, 0.0)

        # ---- TCN block 2: FILT -> FILT, dilation 2, identity residual
        o = jnp.maximum(causal_conv(h, t2w1, t2b1, 2, FILT, KS, T2), 0.0)
        o = jnp.maximum(causal_conv(o, t2w2, t2b2, 2, FILT, KS, T2), 0.0)
        h = jnp.maximum(o + h, 0.0)

        # ---- classifier on the last timestep
        last = h[:, T2 - 1:T2]                                              # (FILT, 1)
        logits = jnp.dot(clfw, last, preferred_element_type=jnp.float32) + clfb
        out_ref[:, bi:bi + 1] = logits                                      # (NC, 1)


# --------------------------------- wrapper ------------------------------------

def eegtcnet_forward(x, params, dims):
    B = x.shape[0]
    C, T, NC = dims["C"], dims["T"], dims["NC"]
    bt = B                      # whole batch in one grid step (B is small here);
    kdims = dict(dims, B_TILE=bt)

    def const_spec(p):
        nd = p.ndim
        return pl.BlockSpec(p.shape, lambda i, nd=nd: (0,) * nd)

    out = pl.pallas_call(
        functools.partial(eegtcnet_kernel, kdims),
        out_shape=jax.ShapeDtypeStruct((NC, B), jnp.float32),
        grid=(B // bt,),
        in_specs=[pl.BlockSpec((bt, C, T), lambda i: (i, 0, 0))]
                + [const_spec(p) for p in params],
        out_specs=pl.BlockSpec((NC, bt), lambda i: (0, i)),
        compiler_params=pltpu.CompilerParams(
            dimension_semantics=("parallel",)),
    )(x, *params)
    return out.T                                            # (B, n_classes)


# -------------------------- parameter preprocessing ---------------------------

def pool_matrix(t_in, factor):
    t_out = t_in // factor
    rows = jnp.arange(t_in)[:, None]
    cols = jnp.arange(t_out)[None, :]
    return jnp.where(rows // factor == cols, 1.0 / factor, 0.0).astype(jnp.float32)


def _bn_scale_shift(bn, eps=1e-3):
    scale = bn["gamma"] / jnp.sqrt(bn["var"] + eps)
    shift = bn["beta"] - bn["mean"] * scale
    return scale, shift


def _renorm_rows(w, max_norm):
    # torch.renorm(w, p=2, dim=0, maxnorm=max_norm)
    flat = w.reshape(w.shape[0], -1)
    norms = jnp.sqrt(jnp.sum(flat * flat, axis=1, keepdims=True))
    factor = jnp.minimum(1.0, max_norm / jnp.maximum(norms, 1e-12))
    return (flat * factor).reshape(w.shape)


def _conv3d_to_2d(w):  # (out, in, K) -> (out, K*in), tap k at cols [k*in:(k+1)*in]
    o, i, k = w.shape
    return jnp.transpose(w, (0, 2, 1)).reshape(o, k * i)


def fold_params(raw, dims):
    C, T = dims["C"], dims["T"]
    D, F2 = dims["D"], dims["F2"]
    KL, KD = dims["KL"], dims["KD"]
    FILT, NC = dims["FILT"], dims["NC"]

    g1, s1 = _bn_scale_shift(raw["bn1"])
    g2, s2 = _bn_scale_shift(raw["bn2"])
    g3, s3 = _bn_scale_shift(raw["bn3"])
    w_dw = _renorm_rows(raw["w_dw"], 1.0)      # Conv2dWithConstraint(max_norm=1)
    clf_w = _renorm_rows(raw["clf_w"], 0.25)   # LinearWithConstraint(max_norm=0.25)

    f_of_o = jnp.arange(F2) // D
    # fused temporal(1,KL) conv + grouped spatial (C,1) conv, BN1/BN2 folded
    wc = (g2[:, None, None] * g1[f_of_o][:, None, None]
          * w_dw[:, :, None] * raw["w1"][f_of_o][:, None, :])          # (F2, C, KL)
    wc2d = jnp.transpose(wc, (0, 2, 1)).reshape(F2, KL * C)            # cols: k*C + c
    b12 = g2 * (s1[f_of_o] * jnp.sum(w_dw, axis=1)) + s2               # (F2,)

    # fused depthwise(1,KD) + pointwise conv, BN3 folded
    wsep = g3[:, None, None] * raw["w_pw"][:, :, None] * raw["w_dt"][None, :, :]
    wsep2d = jnp.transpose(wsep, (0, 2, 1)).reshape(F2, KD * F2)       # cols: k*F2 + o
    b3 = s3                                                            # (F2,)

    def fold_tcn_conv(w, b, bn):
        g, s = _bn_scale_shift(bn)
        return _conv3d_to_2d(g[:, None, None] * w), g * b + s

    t1w1, t1b1 = fold_tcn_conv(raw["t1_w1"], raw["t1_b1"], raw["t1_bn1"])
    t1w2, t1b2 = fold_tcn_conv(raw["t1_w2"], raw["t1_b2"], raw["t1_bn2"])
    t2w1, t2b1 = fold_tcn_conv(raw["t2_w1"], raw["t2_b1"], raw["t2_bn1"])
    t2w2, t2b2 = fold_tcn_conv(raw["t2_w2"], raw["t2_b2"], raw["t2_bn2"])

    p1 = pool_matrix(T, 8)
    p2 = pool_matrix(T // 8, 8)

    # pack every bias / shift vector into one lane-padded (16, 8) array
    rows = max(F2, FILT, NC)

    def col(v):
        return jnp.pad(v, (0, rows - v.shape[0]))[:, None]

    biases = jnp.concatenate(
        [col(b12), col(b3), col(t1b1), col(t1b2), col(raw["t1_pb"]),
         col(t2b1), col(t2b2), col(raw["clf_b"])], axis=1)

    params = [wc2d, wsep2d, p1, p2,
              t1w1, t1w2, raw["t1_pw"], t2w1, t2w2, clf_w, biases]
    return [p.astype(jnp.float32) for p in params]


# ------------------------- deterministic raw parameters -----------------------

def init_raw_params(key, dims):
    C = dims["C"]
    F1, F2 = dims["F1"], dims["F2"]
    KL, KD = dims["KL"], dims["KD"]
    FILT, KS, NC = dims["FILT"], dims["KS"], dims["NC"]

    keys = iter(jax.random.split(key, 64))
    nrm = lambda shape, s=0.3: (s * jax.random.normal(next(keys), shape)).astype(jnp.float32)

    def bn(c):
        k1, k2, k3, k4 = jax.random.split(next(keys), 4)
        return dict(gamma=(1.0 + 0.1 * jax.random.normal(k1, (c,))).astype(jnp.float32),
                    beta=(0.1 * jax.random.normal(k2, (c,))).astype(jnp.float32),
                    mean=(0.1 * jax.random.normal(k3, (c,))).astype(jnp.float32),
                    var=(1.0 + 0.2 * jax.random.uniform(k4, (c,))).astype(jnp.float32))

    return dict(
        w1=nrm((F1, KL)), bn1=bn(F1),
        w_dw=nrm((F2, C)), bn2=bn(F2),
        w_dt=nrm((F2, KD)), w_pw=nrm((F2, F2)), bn3=bn(F2),
        t1_w1=nrm((FILT, F2, KS)), t1_b1=nrm((FILT,), 0.1), t1_bn1=bn(FILT),
        t1_w2=nrm((FILT, FILT, KS)), t1_b2=nrm((FILT,), 0.1), t1_bn2=bn(FILT),
        t1_pw=nrm((FILT, F2)), t1_pb=nrm((FILT,), 0.1),
        t2_w1=nrm((FILT, FILT, KS)), t2_b1=nrm((FILT,), 0.1), t2_bn1=bn(FILT),
        t2_w2=nrm((FILT, FILT, KS)), t2_b2=nrm((FILT,), 0.1), t2_bn2=bn(FILT),
        clf_w=nrm((NC, FILT)), clf_b=nrm((NC,), 0.1),
    )


# ------------------------------ pure-JAX reference -----------------------------

def reference_forward(x, raw, dims):
    C, T = dims["C"], dims["T"]
    F1, D, F2 = dims["F1"], dims["D"], dims["F2"]
    KL, KD = dims["KL"], dims["KD"]
    eps = 1e-3
    B = x.shape[0]

    def bn(h, p, ax):
        shape = [1] * h.ndim
        shape[ax] = -1
        g = (p["gamma"] / jnp.sqrt(p["var"] + eps)).reshape(shape)
        b = (p["beta"] - p["mean"] * p["gamma"] / jnp.sqrt(p["var"] + eps)).reshape(shape)
        return h * g + b

    elu = lambda v: jnp.where(v > 0, v, jnp.exp(v) - 1.0)

    lp, rp = (KL - 1) // 2, KL - 1 - (KL - 1) // 2
    xp = jnp.pad(x, ((0, 0), (0, 0), (lp, rp)))
    s1 = jnp.stack([sum(raw["w1"][f, k] * xp[:, :, k:k + T] for k in range(KL))
                    for f in range(F1)], axis=1)                   # (B, F1, C, T)
    s1 = bn(s1, raw["bn1"], 1)
    w_dw = _renorm_rows(raw["w_dw"], 1.0)
    h = jnp.stack([jnp.einsum('c,bct->bt', w_dw[o], s1[:, o // D])
                   for o in range(F2)], axis=1)                    # (B, F2, T)
    h = elu(bn(h, raw["bn2"], 1))
    h = h.reshape(B, F2, T // 8, 8).mean(-1)
    T1 = T // 8
    lp2, rp2 = (KD - 1) // 2, KD - 1 - (KD - 1) // 2
    hp = jnp.pad(h, ((0, 0), (0, 0), (lp2, rp2)))
    dw = sum(raw["w_dt"][None, :, k, None] * hp[:, :, k:k + T1] for k in range(KD))
    h = jnp.einsum('po,bot->bpt', raw["w_pw"], dw)
    h = elu(bn(h, raw["bn3"], 1))
    h = h.reshape(B, F2, T1 // 8, 8).mean(-1)                      # (B, F2, T2)

    def causal(hh, w, b, dil):
        _, _, K = w.shape
        Tt = hh.shape[-1]
        hz = jnp.pad(hh, ((0, 0), (0, 0), ((K - 1) * dil, 0)))
        return sum(jnp.einsum('oi,bit->bot', w[:, :, k], hz[:, :, k * dil:k * dil + Tt])
                   for k in range(K)) + b[None, :, None]

    def tcn(hh, w1, b1, bn1, w2, b2, bn2, dil, pw=None, pb=None):
        res = hh if pw is None else jnp.einsum('oi,bit->bot', pw, hh) + pb[None, :, None]
        o = jax.nn.relu(bn(causal(hh, w1, b1, dil), bn1, 1))
        o = jax.nn.relu(bn(causal(o, w2, b2, dil), bn2, 1))
        return jax.nn.relu(o + res)

    h = tcn(h, raw["t1_w1"], raw["t1_b1"], raw["t1_bn1"],
            raw["t1_w2"], raw["t1_b2"], raw["t1_bn2"], 1,
            raw["t1_pw"], raw["t1_pb"])
    h = tcn(h, raw["t2_w1"], raw["t2_b1"], raw["t2_bn1"],
            raw["t2_w2"], raw["t2_b2"], raw["t2_bn2"], 2)
    clf_w = _renorm_rows(raw["clf_w"], 0.25)
    return jnp.einsum('of,bf->bo', clf_w, h[:, :, -1]) + raw["clf_b"][None, :]


# ----------------------------------- main --------------------------------------

if __name__ == "__main__":
    # Small shapes consistent with the module: B=2 trials, 8 EEG channels,
    # T=128 samples (divisible by 64 so both AvgPool(1,8) stages are exact),
    # n_classes=4, F1=8, D=2 -> F2=16, kernLength=32, filt=12, kernel_s=4, layers=2.
    dims = dict(C=8, T=128, F1=8, D=2, F2=16, KL=32, KD=16, FILT=12, KS=4, NC=4)
    B = 2

    key = jax.random.PRNGKey(0)
    kx, kp = jax.random.split(key)
    x = jax.random.normal(kx, (B, dims["C"], dims["T"]), jnp.float32)

    raw = init_raw_params(kp, dims)
    params = fold_params(raw, dims)

    out = eegtcnet_forward(x, params, dims)
    out = jax.block_until_ready(out)

    assert out.shape == (B, dims["NC"]), out.shape
    assert bool(jnp.all(jnp.isfinite(out)))

    ref = reference_forward(x, raw, dims)
    assert bool(jnp.allclose(out, ref, rtol=0.05, atol=0.05)), (out, ref)

    print("KERNEL_OK")
</pallas_src>

<mosaic_0001>
module attributes {stable_mosaic.version = 11 : i64} {
  func.func @eegtcnet_kernel(%arg0: i32, %arg1: memref<2x8x128xf32, #tpu.memory_space<vmem>>, %arg2: memref<16x256xf32, #tpu.memory_space<vmem>>, %arg3: memref<16x256xf32, #tpu.memory_space<vmem>>, %arg4: memref<128x16xf32, #tpu.memory_space<vmem>>, %arg5: memref<16x2xf32, #tpu.memory_space<vmem>>, %arg6: memref<12x64xf32, #tpu.memory_space<vmem>>, %arg7: memref<12x48xf32, #tpu.memory_space<vmem>>, %arg8: memref<12x16xf32, #tpu.memory_space<vmem>>, %arg9: memref<12x48xf32, #tpu.memory_space<vmem>>, %arg10: memref<12x48xf32, #tpu.memory_space<vmem>>, %arg11: memref<4x12xf32, #tpu.memory_space<vmem>>, %arg12: memref<16x8xf32, #tpu.memory_space<vmem>>, %arg13: memref<4x2xf32, #tpu.memory_space<vmem>>) attributes {dimension_semantics = [#tpu.dimension_semantics<parallel>], iteration_bounds = array<i64: 1>, scalar_prefetch = 0 : i64, scratch_operands = 0 : i64, tpu.core_type = #tpu.core_type<tc>, window_params = [{transform_indices = @transform_0, window_bounds = array<i64: 2, 8, 128>}, {pipeline_mode = #tpu.pipeline_mode<synchronous>, transform_indices = @transform_1, window_bounds = array<i64: 16, 256>}, {pipeline_mode = #tpu.pipeline_mode<synchronous>, transform_indices = @transform_2, window_bounds = array<i64: 16, 256>}, {pipeline_mode = #tpu.pipeline_mode<synchronous>, transform_indices = @transform_3, window_bounds = array<i64: 128, 16>}, {pipeline_mode = #tpu.pipeline_mode<synchronous>, transform_indices = @transform_4, window_bounds = array<i64: 16, 2>}, {pipeline_mode = #tpu.pipeline_mode<synchronous>, transform_indices = @transform_5, window_bounds = array<i64: 12, 64>}, {pipeline_mode = #tpu.pipeline_mode<synchronous>, transform_indices = @transform_6, window_bounds = array<i64: 12, 48>}, {pipeline_mode = #tpu.pipeline_mode<synchronous>, transform_indices = @transform_7, window_bounds = array<i64: 12, 16>}, {pipeline_mode = #tpu.pipeline_mode<synchronous>, transform_indices = @transform_8, window_bounds = array<i64: 12, 48>}, {pipeline_mode = #tpu.pipeline_mode<synchronous>, transform_indices = @transform_9, window_bounds = array<i64: 12, 48>}, {pipeline_mode = #tpu.pipeline_mode<synchronous>, transform_indices = @transform_10, window_bounds = array<i64: 4, 12>}, {pipeline_mode = #tpu.pipeline_mode<synchronous>, transform_indices = @transform_11, window_bounds = array<i64: 16, 8>}, {transform_indices = @transform_12, window_bounds = array<i64: 4, 2>}]} {
    %c0 = arith.constant 0 : index
    %c0_0 = arith.constant 0 : index
    %0 = vector.load %arg2[%c0, %c0_0] : memref<16x256xf32, #tpu.memory_space<vmem>>, vector<16x256xf32>
    %c0_1 = arith.constant 0 : index
    %c0_2 = arith.constant 0 : index
    %1 = vector.load %arg3[%c0_1, %c0_2] : memref<16x256xf32, #tpu.memory_space<vmem>>, vector<16x256xf32>
    %c0_3 = arith.constant 0 : index
    %c0_4 = arith.constant 0 : index
    %2 = vector.load %arg4[%c0_3, %c0_4] : memref<128x16xf32, #tpu.memory_space<vmem>>, vector<128x16xf32>
    %c0_5 = arith.constant 0 : index
    %c0_6 = arith.constant 0 : index
    %3 = vector.load %arg5[%c0_5, %c0_6] : memref<16x2xf32, #tpu.memory_space<vmem>>, vector<16x2xf32>
    %c0_7 = arith.constant 0 : index
    %c0_8 = arith.constant 0 : index
    %4 = vector.load %arg6[%c0_7, %c0_8] : memref<12x64xf32, #tpu.memory_space<vmem>>, vector<12x64xf32>
    %c0_9 = arith.constant 0 : index
    %c0_10 = arith.constant 0 : index
    %5 = vector.load %arg7[%c0_9, %c0_10] : memref<12x48xf32, #tpu.memory_space<vmem>>, vector<12x48xf32>
    %c0_11 = arith.constant 0 : index
    %c0_12 = arith.constant 0 : index
    %6 = vector.load %arg8[%c0_11, %c0_12] : memref<12x16xf32, #tpu.memory_space<vmem>>, vector<12x16xf32>
    %c0_13 = arith.constant 0 : index
    %c0_14 = arith.constant 0 : index
    %7 = vector.load %arg9[%c0_13, %c0_14] : memref<12x48xf32, #tpu.memory_space<vmem>>, vector<12x48xf32>
    %c0_15 = arith.constant 0 : index
    %c0_16 = arith.constant 0 : index
    %8 = vector.load %arg10[%c0_15, %c0_16] : memref<12x48xf32, #tpu.memory_space<vmem>>, vector<12x48xf32>
    %c0_17 = arith.constant 0 : index
    %c0_18 = arith.constant 0 : index
    %9 = vector.load %arg11[%c0_17, %c0_18] : memref<4x12xf32, #tpu.memory_space<vmem>>, vector<4x12xf32>
    %c0_19 = arith.constant 0 : index
    %c0_20 = arith.constant 0 : index
    %10 = vector.load %arg12[%c0_19, %c0_20] : memref<16x8xf32, #tpu.memory_space<vmem>>, vector<16x8xf32>
    %11 = vector.extract_strided_slice %10 {offsets = [0, 0], sizes = [16, 1], strides = [1, 1]} : vector<16x8xf32> to vector<16x1xf32>
    %12 = vector.extract_strided_slice %10 {offsets = [0, 1], sizes = [16, 1], strides = [1, 1]} : vector<16x8xf32> to vector<16x1xf32>
    %13 = vector.extract_strided_slice %10 {offsets = [0, 2], sizes = [12, 1], strides = [1, 1]} : vector<16x8xf32> to vector<12x1xf32>
    %14 = vector.extract_strided_slice %10 {offsets = [0, 3], sizes = [12, 1], strides = [1, 1]} : vector<16x8xf32> to vector<12x1xf32>
    %15 = vector.extract_strided_slice %10 {offsets = [0, 4], sizes = [12, 1], strides = [1, 1]} : vector<16x8xf32> to vector<12x1xf32>
    %16 = vector.extract_strided_slice %10 {offsets = [0, 5], sizes = [12, 1], strides = [1, 1]} : vector<16x8xf32> to vector<12x1xf32>
    %17 = vector.extract_strided_slice %10 {offsets = [0, 6], sizes = [12, 1], strides = [1, 1]} : vector<16x8xf32> to vector<12x1xf32>
    %18 = vector.extract_strided_slice %10 {offsets = [0, 7], sizes = [4, 1], strides = [1, 1]} : vector<16x8xf32> to vector<4x1xf32>
    %c0_21 = arith.constant 0 : index
    %c0_22 = arith.constant 0 : index
    %c0_23 = arith.constant 0 : index
    %19 = vector.load %arg1[%c0_21, %c0_22, %c0_23] : memref<2x8x128xf32, #tpu.memory_space<vmem>>, vector<1x8x128xf32>
    %20 = vector.shape_cast %19 : vector<1x8x128xf32> to vector<8x128xf32>
    %cst = arith.constant 0.000000e+00 : f32
    %21 = vector.broadcast %cst : f32 to vector<8x15xf32>
    %cst_24 = arith.constant 0.000000e+00 : f32
    %22 = vector.broadcast %cst_24 : f32 to vector<8x16xf32>
    %23 = tpu.concatenate %21, %20, %22 in 1 : vector<8x15xf32>, vector<8x128xf32>, vector<8x16xf32> -> vector<8x159xf32>
    %24 = vector.extract_strided_slice %23 {offsets = [0, 0], sizes = [8, 128], strides = [1, 1]} : vector<8x159xf32> to vector<8x128xf32>
    %25 = vector.extract_strided_slice %23 {offsets = [0, 1], sizes = [8, 128], strides = [1, 1]} : vector<8x159xf32> to vector<8x128xf32>
    %26 = vector.extract_strided_slice %23 {offsets = [0, 2], sizes = [8, 128], strides = [1, 1]} : vector<8x159xf32> to vector<8x128xf32>
    %27 = vector.extract_strided_slice %23 {offsets = [0, 3], sizes = [8, 128], strides = [1, 1]} : vector<8x159xf32> to vector<8x128xf32>
    %28 = vector.extract_strided_slice %23 {offsets = [0, 4], sizes = [8, 128], strides = [1, 1]} : vector<8x159xf32> to vector<8x128xf32>
    %29 = vector.extract_strided_slice %23 {offsets = [0, 5], sizes = [8, 128], strides = [1, 1]} : vector<8x159xf32> to vector<8x128xf32>
    %30 = vector.extract_strided_slice %23 {offsets = [0, 6], sizes = [8, 128], strides = [1, 1]} : vector<8x159xf32> to vector<8x128xf32>
    %31 = vector.extract_strided_slice %23 {offsets = [0, 7], sizes = [8, 128], strides = [1, 1]} : vector<8x159xf32> to vector<8x128xf32>
    %32 = vector.extract_strided_slice %23 {offsets = [0, 8], sizes = [8, 128], strides = [1, 1]} : vector<8x159xf32> to vector<8x128xf32>
    %33 = vector.extract_strided_slice %23 {offsets = [0, 9], sizes = [8, 128], strides = [1, 1]} : vector<8x159xf32> to vector<8x128xf32>
    %34 = vector.extract_strided_slice %23 {offsets = [0, 10], sizes = [8, 128], strides = [1, 1]} : vector<8x159xf32> to vector<8x128xf32>
    %35 = vector.extract_strided_slice %23 {offsets = [0, 11], sizes = [8, 128], strides = [1, 1]} : vector<8x159xf32> to vector<8x128xf32>
    %36 = vector.extract_strided_slice %23 {offsets = [0, 12], sizes = [8, 128], strides = [1, 1]} : vector<8x159xf32> to vector<8x128xf32>
    %37 = vector.extract_strided_slice %23 {offsets = [0, 13], sizes = [8, 128], strides = [1, 1]} : vector<8x159xf32> to vector<8x128xf32>
    %38 = vector.extract_strided_slice %23 {offsets = [0, 14], sizes = [8, 128], strides = [1, 1]} : vector<8x159xf32> to vector<8x128xf32>
    %39 = vector.extract_strided_slice %23 {offsets = [0, 15], sizes = [8, 128], strides = [1, 1]} : vector<8x159xf32> to vector<8x128xf32>
    %40 = vector.extract_strided_slice %23 {offsets = [0, 16], sizes = [8, 128], strides = [1, 1]} : vector<8x159xf32> to vector<8x128xf32>
    %41 = vector.extract_strided_slice %23 {offsets = [0, 17], sizes = [8, 128], strides = [1, 1]} : vector<8x159xf32> to vector<8x128xf32>
    %42 = vector.extract_strided_slice %23 {offsets = [0, 18], sizes = [8, 128], strides = [1, 1]} : vector<8x159xf32> to vector<8x128xf32>
    %43 = vector.extract_strided_slice %23 {offsets = [0, 19], sizes = [8, 128], strides = [1, 1]} : vector<8x159xf32> to vector<8x128xf32>
    %44 = vector.extract_strided_slice %23 {offsets = [0, 20], sizes = [8, 128], strides = [1, 1]} : vector<8x159xf32> to vector<8x128xf32>
    %45 = vector.extract_strided_slice %23 {offsets = [0, 21], sizes = [8, 128], strides = [1, 1]} : vector<8x159xf32> to vector<8x128xf32>
    %46 = vector.extract_strided_slice %23 {offsets = [0, 22], sizes = [8, 128], strides = [1, 1]} : vector<8x159xf32> to vector<8x128xf32>
    %47 = vector.extract_strided_slice %23 {offsets = [0, 23], sizes = [8, 128], strides = [1, 1]} : vector<8x159xf32> to vector<8x128xf32>
    %48 = vector.extract_strided_slice %23 {offsets = [0, 24], sizes = [8, 128], strides = [1, 1]} : vector<8x159xf32> to vector<8x128xf32>
    %49 = vector.extract_strided_slice %23 {offsets = [0, 25], sizes = [8, 128], strides = [1, 1]} : vector<8x159xf32> to vector<8x128xf32>
    %50 = vector.extract_strided_slice %23 {offsets = [0, 26], sizes = [8, 128], strides = [1, 1]} : vector<8x159xf32> to vector<8x128xf32>
    %51 = vector.extract_strided_slice %23 {offsets = [0, 27], sizes = [8, 128], strides = [1, 1]} : vector<8x159xf32> to vector<8x128xf32>
    %52 = vector.extract_strided_slice %23 {offsets = [0, 28], sizes = [8, 128], strides = [1, 1]} : vector<8x159xf32> to vector<8x128xf32>
    %53 = vector.extract_strided_slice %23 {offsets = [0, 29], sizes = [8, 128], strides = [1, 1]} : vector<8x159xf32> to vector<8x128xf32>
    %54 = vector.extract_strided_slice %23 {offsets = [0, 30], sizes = [8, 128], strides = [1, 1]} : vector<8x159xf32> to vector<8x128xf32>
    %55 = vector.extract_strided_slice %23 {offsets = [0, 31], sizes = [8, 128], strides = [1, 1]} : vector<8x159xf32> to vector<8x128xf32>
    %56 = tpu.concatenate %24, %25, %26, %27, %28, %29, %30, %31, %32, %33, %34, %35, %36, %37, %38, %39 in 0 : vector<8x128xf32>, vector<8x128xf32>, vector<8x128xf32>, vector<8x128xf32>, vector<8x128xf32>, vector<8x128xf32>, vector<8x128xf32>, vector<8x128xf32>, vector<8x128xf32>, vector<8x128xf32>, vector<8x128xf32>, vector<8x128xf32>, vector<8x128xf32>, vector<8x128xf32>, vector<8x128xf32>, vector<8x128xf32> -> vector<128x128xf32>
    %57 = tpu.concatenate %40, %41, %42, %43, %44, %45, %46, %47, %48, %49, %50, %51, %52, %53, %54, %55 in 0 : vector<8x128xf32>, vector<8x128xf32>, vector<8x128xf32>, vector<8x128xf32>, vector<8x128xf32>, vector<8x128xf32>, vector<8x128xf32>, vector<8x128xf32>, vector<8x128xf32>, vector<8x128xf32>, vector<8x128xf32>, vector<8x128xf32>, vector<8x128xf32>, vector<8x128xf32>, vector<8x128xf32>, vector<8x128xf32> -> vector<128x128xf32>
    %58 = tpu.concatenate %56, %57 in 0 : vector<128x128xf32>, vector<128x128xf32> -> vector<256x128xf32>
    %cst_25 = arith.constant dense<0.000000e+00> : vector<16x128xf32>
    %59 = tpu.matmul %0, %58, %cst_25 {dimension_numbers = #tpu.dot_dimension_numbers<[1], [0], [0], [1], [0, 0, 1, 1], [], []>} : vector<16x256xf32>, vector<256x128xf32>, vector<16x128xf32> -> vector<16x128xf32>
    %60 = vector.broadcast %11 : vector<16x1xf32> to vector<16x128xf32>
    %61 = arith.addf %59, %60 : vector<16x128xf32>
    %cst_26 = arith.constant 0.000000e+00 : f32
    %62 = vector.broadcast %cst_26 : f32 to vector<16x128xf32>
    %63 = arith.cmpf ogt, %61, %62 : vector<16x128xf32>
    %cst_27 = arith.constant 0.000000e+00 : f32
    %64 = vector.broadcast %cst_27 : f32 to vector<16x128xf32>
    %65 = arith.minimumf %61, %64 : vector<16x128xf32>
    %66 = math.exp %65 : vector<16x128xf32>
    %cst_28 = arith.constant 1.000000e+00 : f32
    %67 = vector.broadcast %cst_28 : f32 to vector<16x128xf32>
    %68 = arith.subf %66, %67 : vector<16x128xf32>
    %69 = arith.select %63, %61, %68 : vector<16x128xi1>, vector<16x128xf32>
    %cst_29 = arith.constant dense<0.000000e+00> : vector<16x16xf32>
    %70 = tpu.matmul %69, %2, %cst_29 {dimension_numbers = #tpu.dot_dimension_numbers<[1], [0], [0], [1], [0, 0, 1, 1], [], []>} : vector<16x128xf32>, vector<128x16xf32>, vector<16x16xf32> -> vector<16x16xf32>
    %cst_30 = arith.constant 0.000000e+00 : f32
    %71 = vector.broadcast %cst_30 : f32 to vector<16x7xf32>
    %cst_31 = arith.constant 0.000000e+00 : f32
    %72 = vector.broadcast %cst_31 : f32 to vector<16x8xf32>
    %73 = tpu.concatenate %71, %70, %72 in 1 : vector<16x7xf32>, vector<16x16xf32>, vector<16x8xf32> -> vector<16x31xf32>
    %74 = vector.extract_strided_slice %73 {offsets = [0, 0], sizes = [16, 16], strides = [1, 1]} : vector<16x31xf32> to vector<16x16xf32>
    %75 = vector.extract_strided_slice %73 {offsets = [0, 1], sizes = [16, 16], strides = [1, 1]} : vector<16x31xf32> to vector<16x16xf32>
    %76 = vector.extract_strided_slice %73 {offsets = [0, 2], sizes = [16, 16], strides = [1, 1]} : vector<16x31xf32> to vector<16x16xf32>
    %77 = vector.extract_strided_slice %73 {offsets = [0, 3], sizes = [16, 16], strides = [1, 1]} : vector<16x31xf32> to vector<16x16xf32>
    %78 = vector.extract_strided_slice %73 {offsets = [0, 4], sizes = [16, 16], strides = [1, 1]} : vector<16x31xf32> to vector<16x16xf32>
    %79 = vector.extract_strided_slice %73 {offsets = [0, 5], sizes = [16, 16], strides = [1, 1]} : vector<16x31xf32> to vector<16x16xf32>
    %80 = vector.extract_strided_slice %73 {offsets = [0, 6], sizes = [16, 16], strides = [1, 1]} : vector<16x31xf32> to vector<16x16xf32>
    %81 = vector.extract_strided_slice %73 {offsets = [0, 7], sizes = [16, 16], strides = [1, 1]} : vector<16x31xf32> to vector<16x16xf32>
    %82 = vector.extract_strided_slice %73 {offsets = [0, 8], sizes = [16, 16], strides = [1, 1]} : vector<16x31xf32> to vector<16x16xf32>
    %83 = vector.extract_strided_slice %73 {offsets = [0, 9], sizes = [16, 16], strides = [1, 1]} : vector<16x31xf32> to vector<16x16xf32>
    %84 = vector.extract_strided_slice %73 {offsets = [0, 10], sizes = [16, 16], strides = [1, 1]} : vector<16x31xf32> to vector<16x16xf32>
    %85 = vector.extract_strided_slice %73 {offsets = [0, 11], sizes = [16, 16], strides = [1, 1]} : vector<16x31xf32> to vector<16x16xf32>
    %86 = vector.extract_strided_slice %73 {offsets = [0, 12], sizes = [16, 16], strides = [1, 1]} : vector<16x31xf32> to vector<16x16xf32>
    %87 = vector.extract_strided_slice %73 {offsets = [0, 13], sizes = [16, 16], strides = [1, 1]} : vector<16x31xf32> to vector<16x16xf32>
    %88 = vector.extract_strided_slice %73 {offsets = [0, 14], sizes = [16, 16], strides = [1, 1]} : vector<16x31xf32> to vector<16x16xf32>
    %89 = vector.extract_strided_slice %73 {offsets = [0, 15], sizes = [16, 16], strides = [1, 1]} : vector<16x31xf32> to vector<16x16xf32>
    %90 = tpu.concatenate %74, %75, %76, %77, %78, %79, %80, %81, %82, %83, %84, %85, %86, %87, %88, %89 in 0 : vector<16x16xf32>, vector<16x16xf32>, vector<16x16xf32>, vector<16x16xf32>, vector<16x16xf32>, vector<16x16xf32>, vector<16x16xf32>, vector<16x16xf32>, vector<16x16xf32>, vector<16x16xf32>, vector<16x16xf32>, vector<16x16xf32>, vector<16x16xf32>, vector<16x16xf32>, vector<16x16xf32>, vector<16x16xf32> -> vector<256x16xf32>
    %cst_32 = arith.constant dense<0.000000e+00> : vector<16x16xf32>
    %91 = tpu.matmul %1, %90, %cst_32 {dimension_numbers = #tpu.dot_dimension_numbers<[1], [0], [0], [1], [0, 0, 1, 1], [], []>} : vector<16x256xf32>, vector<256x16xf32>, vector<16x16xf32> -> vector<16x16xf32>
    %92 = vector.broadcast %12 : vector<16x1xf32> to vector<16x16xf32>
    %93 = arith.addf %91, %92 : vector<16x16xf32>
    %cst_33 = arith.constant 0.000000e+00 : f32
    %94 = vector.broadcast %cst_33 : f32 to vector<16x16xf32>
    %95 = arith.cmpf ogt, %93, %94 : vector<16x16xf32>
    %cst_34 = arith.constant 0.000000e+00 : f32
    %96 = vector.broadcast %cst_34 : f32 to vector<16x16xf32>
    %97 = arith.minimumf %93, %96 : vector<16x16xf32>
    %98 = math.exp %97 : vector<16x16xf32>
    %cst_35 = arith.constant 1.000000e+00 : f32
    %99 = vector.broadcast %cst_35 : f32 to vector<16x16xf32>
    %100 = arith.subf %98, %99 : vector<16x16xf32>
    %101 = arith.select %95, %93, %100 : vector<16x16xi1>, vector<16x16xf32>
    %cst_36 = arith.constant dense<0.000000e+00> : vector<16x2xf32>
    %102 = tpu.matmul %101, %3, %cst_36 {dimension_numbers = #tpu.dot_dimension_numbers<[1], [0], [0], [1], [0, 0, 1, 1], [], []>} : vector<16x16xf32>, vector<16x2xf32>, vector<16x2xf32> -> vector<16x2xf32>
    %cst_37 = arith.constant dense<0.000000e+00> : vector<12x2xf32>
    %103 = tpu.matmul %6, %102, %cst_37 {dimension_numbers = #tpu.dot_dimension_numbers<[1], [0], [0], [1], [0, 0, 1, 1], [], []>} : vector<12x16xf32>, vector<16x2xf32>, vector<12x2xf32> -> vector<12x2xf32>
    %104 = vector.broadcast %15 : vector<12x1xf32> to vector<12x2xf32>
    %105 = arith.addf %103, %104 : vector<12x2xf32>
    %cst_38 = arith.constant 0.000000e+00 : f32
    %106 = vector.broadcast %cst_38 : f32 to vector<16x3xf32>
    %107 = tpu.concatenate %106, %102 in 1 : vector<16x3xf32>, vector<16x2xf32> -> vector<16x5xf32>
    %108 = vector.extract_strided_slice %107 {offsets = [0, 0], sizes = [16, 2], strides = [1, 1]} : vector<16x5xf32> to vector<16x2xf32>
    %109 = vector.extract_strided_slice %107 {offsets = [0, 1], sizes = [16, 2], strides = [1, 1]} : vector<16x5xf32> to vector<16x2xf32>
    %110 = vector.extract_strided_slice %107 {offsets = [0, 2], sizes = [16, 2], strides = [1, 1]} : vector<16x5xf32> to vector<16x2xf32>
    %111 = vector.extract_strided_slice %107 {offsets = [0, 3], sizes = [16, 2], strides = [1, 1]} : vector<16x5xf32> to vector<16x2xf32>
    %112 = tpu.concatenate %108, %109, %110, %111 in 0 : vector<16x2xf32>, vector<16x2xf32>, vector<16x2xf32>, vector<16x2xf32> -> vector<64x2xf32>
    %cst_39 = arith.constant dense<0.000000e+00> : vector<12x2xf32>
    %113 = tpu.matmul %4, %112, %cst_39 {dimension_numbers = #tpu.dot_dimension_numbers<[1], [0], [0], [1], [0, 0, 1, 1], [], []>} : vector<12x64xf32>, vector<64x2xf32>, vector<12x2xf32> -> vector<12x2xf32>
    %114 = vector.broadcast %13 : vector<12x1xf32> to vector<12x2xf32>
    %115 = arith.addf %113, %114 : vector<12x2xf32>
    %cst_40 = arith.constant 0.000000e+00 : f32
    %116 = vector.broadcast %cst_40 : f32 to vector<12x2xf32>
    %117 = arith.maximumf %115, %116 : vector<12x2xf32>
    %cst_41 = arith.constant 0.000000e+00 : f32
    %118 = vector.broadcast %cst_41 : f32 to vector<12x3xf32>
    %119 = tpu.concatenate %118, %117 in 1 : vector<12x3xf32>, vector<12x2xf32> -> vector<12x5xf32>
    %120 = vector.extract_strided_slice %119 {offsets = [0, 0], sizes = [12, 2], strides = [1, 1]} : vector<12x5xf32> to vector<12x2xf32>
    %121 = vector.extract_strided_slice %119 {offsets = [0, 1], sizes = [12, 2], strides = [1, 1]} : vector<12x5xf32> to vector<12x2xf32>
    %122 = vector.extract_strided_slice %119 {offsets = [0, 2], sizes = [12, 2], strides = [1, 1]} : vector<12x5xf32> to vector<12x2xf32>
    %123 = vector.extract_strided_slice %119 {offsets = [0, 3], sizes = [12, 2], strides = [1, 1]} : vector<12x5xf32> to vector<12x2xf32>
    %124 = tpu.concatenate %120, %121, %122, %123 in 0 : vector<12x2xf32>, vector<12x2xf32>, vector<12x2xf32>, vector<12x2xf32> -> vector<48x2xf32>
    %cst_42 = arith.constant dense<0.000000e+00> : vector<12x2xf32>
    %125 = tpu.matmul %5, %124, %cst_42 {dimension_numbers = #tpu.dot_dimension_numbers<[1], [0], [0], [1], [0, 0, 1, 1], [], []>} : vector<12x48xf32>, vector<48x2xf32>, vector<12x2xf32> -> vector<12x2xf32>
    %126 = vector.broadcast %14 : vector<12x1xf32> to vector<12x2xf32>
    %127 = arith.addf %125, %126 : vector<12x2xf32>
    %cst_43 = arith.constant 0.000000e+00 : f32
    %128 = vector.broadcast %cst_43 : f32 to vector<12x2xf32>
    %129 = arith.maximumf %127, %128 : vector<12x2xf32>
    %130 = arith.addf %129, %105 : vector<12x2xf32>
    %cst_44 = arith.constant 0.000000e+00 : f32
    %131 = vector.broadcast %cst_44 : f32 to vector<12x2xf32>
    %132 = arith.maximumf %130, %131 : vector<12x2xf32>
    %cst_45 = arith.constant 0.000000e+00 : f32
    %133 = vector.broadcast %cst_45 : f32 to vector<12x6xf32>
    %134 = tpu.concatenate %133, %132 in 1 : vector<12x6xf32>, vector<12x2xf32> -> vector<12x8xf32>
    %135 = vector.extract_strided_slice %134 {offsets = [0, 0], sizes = [12, 2], strides = [1, 1]} : vector<12x8xf32> to vector<12x2xf32>
    %136 = vector.extract_strided_slice %134 {offsets = [0, 2], sizes = [12, 2], strides = [1, 1]} : vector<12x8xf32> to vector<12x2xf32>
    %137 = vector.extract_strided_slice %134 {offsets = [0, 4], sizes = [12, 2], strides = [1, 1]} : vector<12x8xf32> to vector<12x2xf32>
    %138 = vector.extract_strided_slice %134 {offsets = [0, 6], sizes = [12, 2], strides = [1, 1]} : vector<12x8xf32> to vector<12x2xf32>
    %139 = tpu.concatenate %135, %136, %137, %138 in 0 : vector<12x2xf32>, vector<12x2xf32>, vector<12x2xf32>, vector<12x2xf32> -> vector<48x2xf32>
    %cst_46 = arith.constant dense<0.000000e+00> : vector<12x2xf32>
    %140 = tpu.matmul %7, %139, %cst_46 {dimension_numbers = #tpu.dot_dimension_numbers<[1], [0], [0], [1], [0, 0, 1, 1], [], []>} : vector<12x48xf32>, vector<48x2xf32>, vector<12x2xf32> -> vector<12x2xf32>
    %141 = vector.broadcast %16 : vector<12x1xf32> to vector<12x2xf32>
    %142 = arith.addf %140, %141 : vector<12x2xf32>
    %cst_47 = arith.constant 0.000000e+00 : f32
    %143 = vector.broadcast %cst_47 : f32 to vector<12x2xf32>
    %144 = arith.maximumf %142, %143 : vector<12x2xf32>
    %cst_48 = arith.constant 0.000000e+00 : f32
    %145 = vector.broadcast %cst_48 : f32 to vector<12x6xf32>
    %146 = tpu.concatenate %145, %144 in 1 : vector<12x6xf32>, vector<12x2xf32> -> vector<12x8xf32>
    %147 = vector.extract_strided_slice %146 {offsets = [0, 0], sizes = [12, 2], strides = [1, 1]} : vector<12x8xf32> to vector<12x2xf32>
    %148 = vector.extract_strided_slice %146 {offsets = [0, 2], sizes = [12, 2], strides = [1, 1]} : vector<12x8xf32> to vector<12x2xf32>
    %149 = vector.extract_strided_slice %146 {offsets = [0, 4], sizes = [12, 2], strides = [1, 1]} : vector<12x8xf32> to vector<12x2xf32>
    %150 = vector.extract_strided_slice %146 {offsets = [0, 6], sizes = [12, 2], strides = [1, 1]} : vector<12x8xf32> to vector<12x2xf32>
    %151 = tpu.concatenate %147, %148, %149, %150 in 0 : vector<12x2xf32>, vector<12x2xf32>, vector<12x2xf32>, vector<12x2xf32> -> vector<48x2xf32>
    %cst_49 = arith.constant dense<0.000000e+00> : vector<12x2xf32>
    %152 = tpu.matmul %8, %151, %cst_49 {dimension_numbers = #tpu.dot_dimension_numbers<[1], [0], [0], [1], [0, 0, 1, 1], [], []>} : vector<12x48xf32>, vector<48x2xf32>, vector<12x2xf32> -> vector<12x2xf32>
    %153 = vector.broadcast %17 : vector<12x1xf32> to vector<12x2xf32>
    %154 = arith.addf %152, %153 : vector<12x2xf32>
    %cst_50 = arith.constant 0.000000e+00 : f32
    %155 = vector.broadcast %cst_50 : f32 to vector<12x2xf32>
    %156 = arith.maximumf %154, %155 : vector<12x2xf32>
    %157 = arith.addf %156, %132 : vector<12x2xf32>
    %cst_51 = arith.constant 0.000000e+00 : f32
    %158 = vector.broadcast %cst_51 : f32 to vector<12x2xf32>
    %159 = arith.maximumf %157, %158 : vector<12x2xf32>
    %160 = vector.extract_strided_slice %159 {offsets = [0, 1], sizes = [12, 1], strides = [1, 1]} : vector<12x2xf32> to vector<12x1xf32>
    %cst_52 = arith.constant dense<0.000000e+00> : vector<4x1xf32>
    %161 = tpu.matmul %9, %160, %cst_52 {dimension_numbers = #tpu.dot_dimension_numbers<[1], [0], [0], [1], [0, 0, 1, 1], [], []>} : vector<4x12xf32>, vector<12x1xf32>, vector<4x1xf32> -> vector<4x1xf32>
    %162 = arith.addf %161, %18 : vector<4x1xf32>
    %c0_53 = arith.constant 0 : index
    %c0_54 = arith.constant 0 : index
    %163 = vector.load %arg13[%c0_53, %c0_54] : memref<4x2xf32, #tpu.memory_space<vmem>>, vector<4x1xf32>
    tpu.vector_store %arg13[%c0_53, %c0_54], %162 {strides = array<i32>} : memref<4x2xf32, #tpu.memory_space<vmem>>, vector<4x1xf32>,
    %c1 = arith.constant 1 : index
    %c0_55 = arith.constant 0 : index
    %c0_56 = arith.constant 0 : index
    %164 = vector.load %arg1[%c1, %c0_55, %c0_56] : memref<2x8x128xf32, #tpu.memory_space<vmem>>, vector<1x8x128xf32>
    %165 = vector.shape_cast %164 : vector<1x8x128xf32> to vector<8x128xf32>
    %cst_57 = arith.constant 0.000000e+00 : f32
    %166 = vector.broadcast %cst_57 : f32 to vector<8x15xf32>
    %cst_58 = arith.constant 0.000000e+00 : f32
    %167 = vector.broadcast %cst_58 : f32 to vector<8x16xf32>
    %168 = tpu.concatenate %166, %165, %167 in 1 : vector<8x15xf32>, vector<8x128xf32>, vector<8x16xf32> -> vector<8x159xf32>
    %169 = vector.extract_strided_slice %168 {offsets = [0, 0], sizes = [8, 128], strides = [1, 1]} : vector<8x159xf32> to vector<8x128xf32>
    %170 = vector.extract_strided_slice %168 {offsets = [0, 1], sizes = [8, 128], strides = [1, 1]} : vector<8x159xf32> to vector<8x128xf32>
    %171 = vector.extract_strided_slice %168 {offsets = [0, 2], sizes = [8, 128], strides = [1, 1]} : vector<8x159xf32> to vector<8x128xf32>
    %172 = vector.extract_strided_slice %168 {offsets = [0, 3], sizes = [8, 128], strides = [1, 1]} : vector<8x159xf32> to vector<8x128xf32>
    %173 = vector.extract_strided_slice %168 {offsets = [0, 4], sizes = [8, 128], strides = [1, 1]} : vector<8x159xf32> to vector<8x128xf32>
    %174 = vector.extract_strided_slice %168 {offsets = [0, 5], sizes = [8, 128], strides = [1, 1]} : vector<8x159xf32> to vector<8x128xf32>
    %175 = vector.extract_strided_slice %168 {offsets = [0, 6], sizes = [8, 128], strides = [1, 1]} : vector<8x159xf32> to vector<8x128xf32>
    %176 = vector.extract_strided_slice %168 {offsets = [0, 7], sizes = [8, 128], strides = [1, 1]} : vector<8x159xf32> to vector<8x128xf32>
    %177 = vector.extract_strided_slice %168 {offsets = [0, 8], sizes = [8, 128], strides = [1, 1]} : vector<8x159xf32> to vector<8x128xf32>
    %178 = vector.extract_strided_slice %168 {offsets = [0, 9], sizes = [8, 128], strides = [1, 1]} : vector<8x159xf32> to vector<8x128xf32>
    %179 = vector.extract_strided_slice %168 {offsets = [0, 10], sizes = [8, 128], strides = [1, 1]} : vector<8x159xf32> to vector<8x128xf32>
    %180 = vector.extract_strided_slice %168 {offsets = [0, 11], sizes = [8, 128], strides = [1, 1]} : vector<8x159xf32> to vector<8x128xf32>
    %181 = vector.extract_strided_slice %168 {offsets = [0, 12], sizes = [8, 128], strides = [1, 1]} : vector<8x159xf32> to vector<8x128xf32>
    %182 = vector.extract_strided_slice %168 {offsets = [0, 13], sizes = [8, 128], strides = [1, 1]} : vector<8x159xf32> to vector<8x128xf32>
    %183 = vector.extract_strided_slice %168 {offsets = [0, 14], sizes = [8, 128], strides = [1, 1]} : vector<8x159xf32> to vector<8x128xf32>
    %184 = vector.extract_strided_slice %168 {offsets = [0, 15], sizes = [8, 128], strides = [1, 1]} : vector<8x159xf32> to vector<8x128xf32>
    %185 = vector.extract_strided_slice %168 {offsets = [0, 16], sizes = [8, 128], strides = [1, 1]} : vector<8x159xf32> to vector<8x128xf32>
    %186 = vector.extract_strided_slice %168 {offsets = [0, 17], sizes = [8, 128], strides = [1, 1]} : vector<8x159xf32> to vector<8x128xf32>
    %187 = vector.extract_strided_slice %168 {offsets = [0, 18], sizes = [8, 128], strides = [1, 1]} : vector<8x159xf32> to vector<8x128xf32>
    %188 = vector.extract_strided_slice %168 {offsets = [0, 19], sizes = [8, 128], strides = [1, 1]} : vector<8x159xf32> to vector<8x128xf32>
    %189 = vector.extract_strided_slice %168 {offsets = [0, 20], sizes = [8, 128], strides = [1, 1]} : vector<8x159xf32> to vector<8x128xf32>
    %190 = vector.extract_strided_slice %168 {offsets = [0, 21], sizes = [8, 128], strides = [1, 1]} : vector<8x159xf32> to vector<8x128xf32>
    %191 = vector.extract_strided_slice %168 {offsets = [0, 22], sizes = [8, 128], strides = [1, 1]} : vector<8x159xf32> to vector<8x128xf32>
    %192 = vector.extract_strided_slice %168 {offsets = [0, 23], sizes = [8, 128], strides = [1, 1]} : vector<8x159xf32> to vector<8x128xf32>
    %193 = vector.extract_strided_slice %168 {offsets = [0, 24], sizes = [8, 128], strides = [1, 1]} : vector<8x159xf32> to vector<8x128xf32>
    %194 = vector.extract_strided_slice %168 {offsets = [0, 25], sizes = [8, 128], strides = [1, 1]} : vector<8x159xf32> to vector<8x128xf32>
    %195 = vector.extract_strided_slice %168 {offsets = [0, 26], sizes = [8, 128], strides = [1, 1]} : vector<8x159xf32> to vector<8x128xf32>
    %196 = vector.extract_strided_slice %168 {offsets = [0, 27], sizes = [8, 128], strides = [1, 1]} : vector<8x159xf32> to vector<8x128xf32>
    %197 = vector.extract_strided_slice %168 {offsets = [0, 28], sizes = [8, 128], strides = [1, 1]} : vector<8x159xf32> to vector<8x128xf32>
    %198 = vector.extract_strided_slice %168 {offsets = [0, 29], sizes = [8, 128], strides = [1, 1]} : vector<8x159xf32> to vector<8x128xf32>
    %199 = vector.extract_strided_slice %168 {offsets = [0, 30], sizes = [8, 128], strides = [1, 1]} : vector<8x159xf32> to vector<8x128xf32>
    %200 = vector.extract_strided_slice %168 {offsets = [0, 31], sizes = [8, 128], strides = [1, 1]} : vector<8x159xf32> to vector<8x128xf32>
    %201 = tpu.concatenate %169, %170, %171, %172, %173, %174, %175, %176, %177, %178, %179, %180, %181, %182, %183, %184 in 0 : vector<8x128xf32>, vector<8x128xf32>, vector<8x128xf32>, vector<8x128xf32>, vector<8x128xf32>, vector<8x128xf32>, vector<8x128xf32>, vector<8x128xf32>, vector<8x128xf32>, vector<8x128xf32>, vector<8x128xf32>, vector<8x128xf32>, vector<8x128xf32>, vector<8x128xf32>, vector<8x128xf32>, vector<8x128xf32> -> vector<128x128xf32>
    %202 = tpu.concatenate %185, %186, %187, %188, %189, %190, %191, %192, %193, %194, %195, %196, %197, %198, %199, %200 in 0 : vector<8x128xf32>, vector<8x128xf32>, vector<8x128xf32>, vector<8x128xf32>, vector<8x128xf32>, vector<8x128xf32>, vector<8x128xf32>, vector<8x128xf32>, vector<8x128xf32>, vector<8x128xf32>, vector<8x128xf32>, vector<8x128xf32>, vector<8x128xf32>, vector<8x128xf32>, vector<8x128xf32>, vector<8x128xf32> -> vector<128x128xf32>
    %203 = tpu.concatenate %201, %202 in 0 : vector<128x128xf32>, vector<128x128xf32> -> vector<256x128xf32>
    %cst_59 = arith.constant dense<0.000000e+00> : vector<16x128xf32>
    %204 = tpu.matmul %0, %203, %cst_59 {dimension_numbers = #tpu.dot_dimension_numbers<[1], [0], [0], [1], [0, 0, 1, 1], [], []>} : vector<16x256xf32>, vector<256x128xf32>, vector<16x128xf32> -> vector<16x128xf32>
    %205 = vector.broadcast %11 : vector<16x1xf32> to vector<16x128xf32>
    %206 = arith.addf %204, %205 : vector<16x128xf32>
    %cst_60 = arith.constant 0.000000e+00 : f32
    %207 = vector.broadcast %cst_60 : f32 to vector<16x128xf32>
    %208 = arith.cmpf ogt, %206, %207 : vector<16x128xf32>
    %cst_61 = arith.constant 0.000000e+00 : f32
    %209 = vector.broadcast %cst_61 : f32 to vector<16x128xf32>
    %210 = arith.minimumf %206, %209 : vector<16x128xf32>
    %211 = math.exp %210 : vector<16x128xf32>
    %cst_62 = arith.constant 1.000000e+00 : f32
    %212 = vector.broadcast %cst_62 : f32 to vector<16x128xf32>
    %213 = arith.subf %211, %212 : vector<16x128xf32>
    %214 = arith.select %208, %206, %213 : vector<16x128xi1>, vector<16x128xf32>
    %cst_63 = arith.constant dense<0.000000e+00> : vector<16x16xf32>
    %215 = tpu.matmul %214, %2, %cst_63 {dimension_numbers = #tpu.dot_dimension_numbers<[1], [0], [0], [1], [0, 0, 1, 1], [], []>} : vector<16x128xf32>, vector<128x16xf32>, vector<16x16xf32> -> vector<16x16xf32>
    %cst_64 = arith.constant 0.000000e+00 : f32
    %216 = vector.broadcast %cst_64 : f32 to vector<16x7xf32>
    %cst_65 = arith.constant 0.000000e+00 : f32
    %217 = vector.broadcast %cst_65 : f32 to vector<16x8xf32>
    %218 = tpu.concatenate %216, %215, %217 in 1 : vector<16x7xf32>, vector<16x16xf32>, vector<16x8xf32> -> vector<16x31xf32>
    %219 = vector.extract_strided_slice %218 {offsets = [0, 0], sizes = [16, 16], strides = [1, 1]} : vector<16x31xf32> to vector<16x16xf32>
    %220 = vector.extract_strided_slice %218 {offsets = [0, 1], sizes = [16, 16], strides = [1, 1]} : vector<16x31xf32> to vector<16x16xf32>
    %221 = vector.extract_strided_slice %218 {offsets = [0, 2], sizes = [16, 16], strides = [1, 1]} : vector<16x31xf32> to vector<16x16xf32>
    %222 = vector.extract_strided_slice %218 {offsets = [0, 3], sizes = [16, 16], strides = [1, 1]} : vector<16x31xf32> to vector<16x16xf32>
    %223 = vector.extract_strided_slice %218 {offsets = [0, 4], sizes = [16, 16], strides = [1, 1]} : vector<16x31xf32> to vector<16x16xf32>
    %224 = vector.extract_strided_slice %218 {offsets = [0, 5], sizes = [16, 16], strides = [1, 1]} : vector<16x31xf32> to vector<16x16xf32>
    %225 = vector.extract_strided_slice %218 {offsets = [0, 6], sizes = [16, 16], strides = [1, 1]} : vector<16x31xf32> to vector<16x16xf32>
    %226 = vector.extract_strided_slice %218 {offsets = [0, 7], sizes = [16, 16], strides = [1, 1]} : vector<16x31xf32> to vector<16x16xf32>
    %227 = vector.extract_strided_slice %218 {offsets = [0, 8], sizes = [16, 16], strides = [1, 1]} : vector<16x31xf32> to vector<16x16xf32>
    %228 = vector.extract_strided_slice %218 {offsets = [0, 9], sizes = [16, 16], strides = [1, 1]} : vector<16x31xf32> to vector<16x16xf32>
    %229 = vector.extract_strided_slice %218 {offsets = [0, 10], sizes = [16, 16], strides = [1, 1]} : vector<16x31xf32> to vector<16x16xf32>
    %230 = vector.extract_strided_slice %218 {offsets = [0, 11], sizes = [16, 16], strides = [1, 1]} : vector<16x31xf32> to vector<16x16xf32>
    %231 = vector.extract_strided_slice %218 {offsets = [0, 12], sizes = [16, 16], strides = [1, 1]} : vector<16x31xf32> to vector<16x16xf32>
    %232 = vector.extract_strided_slice %218 {offsets = [0, 13], sizes = [16, 16], strides = [1, 1]} : vector<16x31xf32> to vector<16x16xf32>
    %233 = vector.extract_strided_slice %218 {offsets = [0, 14], sizes = [16, 16], strides = [1, 1]} : vector<16x31xf32> to vector<16x16xf32>
    %234 = vector.extract_strided_slice %218 {offsets = [0, 15], sizes = [16, 16], strides = [1, 1]} : vector<16x31xf32> to vector<16x16xf32>
    %235 = tpu.concatenate %219, %220, %221, %222, %223, %224, %225, %226, %227, %228, %229, %230, %231, %232, %233, %234 in 0 : vector<16x16xf32>, vector<16x16xf32>, vector<16x16xf32>, vector<16x16xf32>, vector<16x16xf32>, vector<16x16xf32>, vector<16x16xf32>, vector<16x16xf32>, vector<16x16xf32>, vector<16x16xf32>, vector<16x16xf32>, vector<16x16xf32>, vector<16x16xf32>, vector<16x16xf32>, vector<16x16xf32>, vector<16x16xf32> -> vector<256x16xf32>
    %cst_66 = arith.constant dense<0.000000e+00> : vector<16x16xf32>
    %236 = tpu.matmul %1, %235, %cst_66 {dimension_numbers = #tpu.dot_dimension_numbers<[1], [0], [0], [1], [0, 0, 1, 1], [], []>} : vector<16x256xf32>, vector<256x16xf32>, vector<16x16xf32> -> vector<16x16xf32>
    %237 = vector.broadcast %12 : vector<16x1xf32> to vector<16x16xf32>
    %238 = arith.addf %236, %237 : vector<16x16xf32>
    %cst_67 = arith.constant 0.000000e+00 : f32
    %239 = vector.broadcast %cst_67 : f32 to vector<16x16xf32>
    %240 = arith.cmpf ogt, %238, %239 : vector<16x16xf32>
    %cst_68 = arith.constant 0.000000e+00 : f32
    %241 = vector.broadcast %cst_68 : f32 to vector<16x16xf32>
    %242 = arith.minimumf %238, %241 : vector<16x16xf32>
    %243 = math.exp %242 : vector<16x16xf32>
    %cst_69 = arith.constant 1.000000e+00 : f32
    %244 = vector.broadcast %cst_69 : f32 to vector<16x16xf32>
    %245 = arith.subf %243, %244 : vector<16x16xf32>
    %246 = arith.select %240, %238, %245 : vector<16x16xi1>, vector<16x16xf32>
    %cst_70 = arith.constant dense<0.000000e+00> : vector<16x2xf32>
    %247 = tpu.matmul %246, %3, %cst_70 {dimension_numbers = #tpu.dot_dimension_numbers<[1], [0], [0], [1], [0, 0, 1, 1], [], []>} : vector<16x16xf32>, vector<16x2xf32>, vector<16x2xf32> -> vector<16x2xf32>
    %cst_71 = arith.constant dense<0.000000e+00> : vector<12x2xf32>
    %248 = tpu.matmul %6, %247, %cst_71 {dimension_numbers = #tpu.dot_dimension_numbers<[1], [0], [0], [1], [0, 0, 1, 1], [], []>} : vector<12x16xf32>, vector<16x2xf32>, vector<12x2xf32> -> vector<12x2xf32>
    %249 = vector.broadcast %15 : vector<12x1xf32> to vector<12x2xf32>
    %250 = arith.addf %248, %249 : vector<12x2xf32>
    %cst_72 = arith.constant 0.000000e+00 : f32
    %251 = vector.broadcast %cst_72 : f32 to vector<16x3xf32>
    %252 = tpu.concatenate %251, %247 in 1 : vector<16x3xf32>, vector<16x2xf32> -> vector<16x5xf32>
    %253 = vector.extract_strided_slice %252 {offsets = [0, 0], sizes = [16, 2], strides = [1, 1]} : vector<16x5xf32> to vector<16x2xf32>
    %254 = vector.extract_strided_slice %252 {offsets = [0, 1], sizes = [16, 2], strides = [1, 1]} : vector<16x5xf32> to vector<16x2xf32>
    %255 = vector.extract_strided_slice %252 {offsets = [0, 2], sizes = [16, 2], strides = [1, 1]} : vector<16x5xf32> to vector<16x2xf32>
    %256 = vector.extract_strided_slice %252 {offsets = [0, 3], sizes = [16, 2], strides = [1, 1]} : vector<16x5xf32> to vector<16x2xf32>
    %257 = tpu.concatenate %253, %254, %255, %256 in 0 : vector<16x2xf32>, vector<16x2xf32>, vector<16x2xf32>, vector<16x2xf32> -> vector<64x2xf32>
    %cst_73 = arith.constant dense<0.000000e+00> : vector<12x2xf32>
    %258 = tpu.matmul %4, %257, %cst_73 {dimension_numbers = #tpu.dot_dimension_numbers<[1], [0], [0], [1], [0, 0, 1, 1], [], []>} : vector<12x64xf32>, vector<64x2xf32>, vector<12x2xf32> -> vector<12x2xf32>
    %259 = vector.broadcast %13 : vector<12x1xf32> to vector<12x2xf32>
    %260 = arith.addf %258, %259 : vector<12x2xf32>
    %cst_74 = arith.constant 0.000000e+00 : f32
    %261 = vector.broadcast %cst_74 : f32 to vector<12x2xf32>
    %262 = arith.maximumf %260, %261 : vector<12x2xf32>
    %cst_75 = arith.constant 0.000000e+00 : f32
    %263 = vector.broadcast %cst_75 : f32 to vector<12x3xf32>
    %264 = tpu.concatenate %263, %262 in 1 : vector<12x3xf32>, vector<12x2xf32> -> vector<12x5xf32>
    %265 = vector.extract_strided_slice %264 {offsets = [0, 0], sizes = [12, 2], strides = [1, 1]} : vector<12x5xf32> to vector<12x2xf32>
    %266 = vector.extract_strided_slice %264 {offsets = [0, 1], sizes = [12, 2], strides = [1, 1]} : vector<12x5xf32> to vector<12x2xf32>
    %267 = vector.extract_strided_slice %264 {offsets = [0, 2], sizes = [12, 2], strides = [1, 1]} : vector<12x5xf32> to vector<12x2xf32>
    %268 = vector.extract_strided_slice %264 {offsets = [0, 3], sizes = [12, 2], strides = [1, 1]} : vector<12x5xf32> to vector<12x2xf32>
    %269 = tpu.concatenate %265, %266, %267, %268 in 0 : vector<12x2xf32>, vector<12x2xf32>, vector<12x2xf32>, vector<12x2xf32> -> vector<48x2xf32>
    %cst_76 = arith.constant dense<0.000000e+00> : vector<12x2xf32>
    %270 = tpu.matmul %5, %269, %cst_76 {dimension_numbers = #tpu.dot_dimension_numbers<[1], [0], [0], [1], [0, 0, 1, 1], [], []>} : vector<12x48xf32>, vector<48x2xf32>, vector<12x2xf32> -> vector<12x2xf32>
    %271 = vector.broadcast %14 : vector<12x1xf32> to vector<12x2xf32>
    %272 = arith.addf %270, %271 : vector<12x2xf32>
    %cst_77 = arith.constant 0.000000e+00 : f32
    %273 = vector.broadcast %cst_77 : f32 to vector<12x2xf32>
    %274 = arith.maximumf %272, %273 : vector<12x2xf32>
    %275 = arith.addf %274, %250 : vector<12x2xf32>
    %cst_78 = arith.constant 0.000000e+00 : f32
    %276 = vector.broadcast %cst_78 : f32 to vector<12x2xf32>
    %277 = arith.maximumf %275, %276 : vector<12x2xf32>
    %cst_79 = arith.constant 0.000000e+00 : f32
    %278 = vector.broadcast %cst_79 : f32 to vector<12x6xf32>
    %279 = tpu.concatenate %278, %277 in 1 : vector<12x6xf32>, vector<12x2xf32> -> vector<12x8xf32>
    %280 = vector.extract_strided_slice %279 {offsets = [0, 0], sizes = [12, 2], strides = [1, 1]} : vector<12x8xf32> to vector<12x2xf32>
    %281 = vector.extract_strided_slice %279 {offsets = [0, 2], sizes = [12, 2], strides = [1, 1]} : vector<12x8xf32> to vector<12x2xf32>
    %282 = vector.extract_strided_slice %279 {offsets = [0, 4], sizes = [12, 2], strides = [1, 1]} : vector<12x8xf32> to vector<12x2xf32>
    %283 = vector.extract_strided_slice %279 {offsets = [0, 6], sizes = [12, 2], strides = [1, 1]} : vector<12x8xf32> to vector<12x2xf32>
    %284 = tpu.concatenate %280, %281, %282, %283 in 0 : vector<12x2xf32>, vector<12x2xf32>, vector<12x2xf32>, vector<12x2xf32> -> vector<48x2xf32>
    %cst_80 = arith.constant dense<0.000000e+00> : vector<12x2xf32>
    %285 = tpu.matmul %7, %284, %cst_80 {dimension_numbers = #tpu.dot_dimension_numbers<[1], [0], [0], [1], [0, 0, 1, 1], [], []>} : vector<12x48xf32>, vector<48x2xf32>, vector<12x2xf32> -> vector<12x2xf32>
    %286 = vector.broadcast %16 : vector<12x1xf32> to vector<12x2xf32>
    %287 = arith.addf %285, %286 : vector<12x2xf32>
    %cst_81 = arith.constant 0.000000e+00 : f32
    %288 = vector.broadcast %cst_81 : f32 to vector<12x2xf32>
    %289 = arith.maximumf %287, %288 : vector<12x2xf32>
    %cst_82 = arith.constant 0.000000e+00 : f32
    %290 = vector.broadcast %cst_82 : f32 to vector<12x6xf32>
    %291 = tpu.concatenate %290, %289 in 1 : vector<12x6xf32>, vector<12x2xf32> -> vector<12x8xf32>
    %292 = vector.extract_strided_slice %291 {offsets = [0, 0], sizes = [12, 2], strides = [1, 1]} : vector<12x8xf32> to vector<12x2xf32>
    %293 = vector.extract_strided_slice %291 {offsets = [0, 2], sizes = [12, 2], strides = [1, 1]} : vector<12x8xf32> to vector<12x2xf32>
    %294 = vector.extract_strided_slice %291 {offsets = [0, 4], sizes = [12, 2], strides = [1, 1]} : vector<12x8xf32> to vector<12x2xf32>
    %295 = vector.extract_strided_slice %291 {offsets = [0, 6], sizes = [12, 2], strides = [1, 1]} : vector<12x8xf32> to vector<12x2xf32>
    %296 = tpu.concatenate %292, %293, %294, %295 in 0 : vector<12x2xf32>, vector<12x2xf32>, vector<12x2xf32>, vector<12x2xf32> -> vector<48x2xf32>
    %cst_83 = arith.constant dense<0.000000e+00> : vector<12x2xf32>
    %297 = tpu.matmul %8, %296, %cst_83 {dimension_numbers = #tpu.dot_dimension_numbers<[1], [0], [0], [1], [0, 0, 1, 1], [], []>} : vector<12x48xf32>, vector<48x2xf32>, vector<12x2xf32> -> vector<12x2xf32>
    %298 = vector.broadcast %17 : vector<12x1xf32> to vector<12x2xf32>
    %299 = arith.addf %297, %298 : vector<12x2xf32>
    %cst_84 = arith.constant 0.000000e+00 : f32
    %300 = vector.broadcast %cst_84 : f32 to vector<12x2xf32>
    %301 = arith.maximumf %299, %300 : vector<12x2xf32>
    %302 = arith.addf %301, %277 : vector<12x2xf32>
    %cst_85 = arith.constant 0.000000e+00 : f32
    %303 = vector.broadcast %cst_85 : f32 to vector<12x2xf32>
    %304 = arith.maximumf %302, %303 : vector<12x2xf32>
    %305 = vector.extract_strided_slice %304 {offsets = [0, 1], sizes = [12, 1], strides = [1, 1]} : vector<12x2xf32> to vector<12x1xf32>
    %cst_86 = arith.constant dense<0.000000e+00> : vector<4x1xf32>
    %306 = tpu.matmul %9, %305, %cst_86 {dimension_numbers = #tpu.dot_dimension_numbers<[1], [0], [0], [1], [0, 0, 1, 1], [], []>} : vector<4x12xf32>, vector<12x1xf32>, vector<4x1xf32> -> vector<4x1xf32>
    %307 = arith.addf %306, %18 : vector<4x1xf32>
    %c0_87 = arith.constant 0 : index
    %c1_88 = arith.constant 1 : index
    %308 = vector.load %arg13[%c0_87, %c1_88] : memref<4x2xf32, #tpu.memory_space<vmem>>, vector<4x1xf32>
    tpu.vector_store %arg13[%c0_87, %c1_88], %307 {strides = array<i32>} : memref<4x2xf32, #tpu.memory_space<vmem>>, vector<4x1xf32>,
    return
  }
  func.func @transform_0(%arg0: i32) -> (i32, i32, i32) {
    %c0_i32 = arith.constant 0 : i32
    %c0_i32_0 = arith.constant 0 : i32
    %c0_i32_1 = arith.constant 0 : i32
    return %arg0, %c0_i32, %c0_i32_0 : i32, i32, i32
  }
  func.func @transform_1(%arg0: i32) -> (i32, i32) {
    %c0_i32 = arith.constant 0 : i32
    %c0_i32_0 = arith.constant 0 : i32
    %c0_i32_1 = arith.constant 0 : i32
    return %c0_i32, %c0_i32_0 : i32, i32
  }
  func.func @transform_2(%arg0: i32) -> (i32, i32) {
    %c0_i32 = arith.constant 0 : i32
    %c0_i32_0 = arith.constant 0 : i32
    %c0_i32_1 = arith.constant 0 : i32
    return %c0_i32, %c0_i32_0 : i32, i32
  }
  func.func @transform_3(%arg0: i32) -> (i32, i32) {
    %c0_i32 = arith.constant 0 : i32
    %c0_i32_0 = arith.constant 0 : i32
    %c0_i32_1 = arith.constant 0 : i32
    return %c0_i32, %c0_i32_0 : i32, i32
  }
  func.func @transform_4(%arg0: i32) -> (i32, i32) {
    %c0_i32 = arith.constant 0 : i32
    %c0_i32_0 = arith.constant 0 : i32
    %c0_i32_1 = arith.constant 0 : i32
    return %c0_i32, %c0_i32_0 : i32, i32
  }
  func.func @transform_5(%arg0: i32) -> (i32, i32) {
    %c0_i32 = arith.constant 0 : i32
    %c0_i32_0 = arith.constant 0 : i32
    %c0_i32_1 = arith.constant 0 : i32
    return %c0_i32, %c0_i32_0 : i32, i32
  }
  func.func @transform_6(%arg0: i32) -> (i32, i32) {
    %c0_i32 = arith.constant 0 : i32
    %c0_i32_0 = arith.constant 0 : i32
    %c0_i32_1 = arith.constant 0 : i32
    return %c0_i32, %c0_i32_0 : i32, i32
  }
  func.func @transform_7(%arg0: i32) -> (i32, i32) {
    %c0_i32 = arith.constant 0 : i32
    %c0_i32_0 = arith.constant 0 : i32
    %c0_i32_1 = arith.constant 0 : i32
    return %c0_i32, %c0_i32_0 : i32, i32
  }
  func.func @transform_8(%arg0: i32) -> (i32, i32) {
    %c0_i32 = arith.constant 0 : i32
    %c0_i32_0 = arith.constant 0 : i32
    %c0_i32_1 = arith.constant 0 : i32
    return %c0_i32, %c0_i32_0 : i32, i32
  }
  func.func @transform_9(%arg0: i32) -> (i32, i32) {
    %c0_i32 = arith.constant 0 : i32
    %c0_i32_0 = arith.constant 0 : i32
    %c0_i32_1 = arith.constant 0 : i32
    return %c0_i32, %c0_i32_0 : i32, i32
  }
  func.func @transform_10(%arg0: i32) -> (i32, i32) {
    %c0_i32 = arith.constant 0 : i32
    %c0_i32_0 = arith.constant 0 : i32
    %c0_i32_1 = arith.constant 0 : i32
    return %c0_i32, %c0_i32_0 : i32, i32
  }
  func.func @transform_11(%arg0: i32) -> (i32, i32) {
    %c0_i32 = arith.constant 0 : i32
    %c0_i32_0 = arith.constant 0 : i32
    %c0_i32_1 = arith.constant 0 : i32
    return %c0_i32, %c0_i32_0 : i32, i32
  }
  func.func @transform_12(%arg0: i32) -> (i32, i32) {
    %c0_i32 = arith.constant 0 : i32
    %c0_i32_0 = arith.constant 0 : i32
    return %c0_i32, %arg0 : i32, i32
  }
}

</mosaic_0001>

<llo_original>
// kernel: tpu_custom_call.1
$region0: #{tpu_custom_call.1}
  #allocation0 [shape = 'u32[]', space=smem, size = 0x4, offset = 0x4, fixed_abs, tag = 'smem constant byte address 0x4 - core index']
  #allocation1 [shape = 'u32[72,128]{1,0:T(1,128)}', space=vmem, size = 0x9000, scoped, tag = 'internal scratch']
  %s0 = inlined_call_operand.vmem [shape: f32[2,8,128], index: 0, kind: input, shape index: {}]
  %s1 = inlined_call_operand.vmem [shape: f32[16,256], index: 1, kind: input, shape index: {}]
  %s2 = inlined_call_operand.vmem [shape: f32[16,256], index: 2, kind: input, shape index: {}]
  %s3 = inlined_call_operand.vmem [shape: f32[128,16], index: 3, kind: input, shape index: {}]
  %s4 = inlined_call_operand.vmem [shape: f32[16,2], index: 4, kind: input, shape index: {}]
  %s5 = inlined_call_operand.vmem [shape: f32[12,64], index: 5, kind: input, shape index: {}]
  %s6 = inlined_call_operand.vmem [shape: f32[12,48], index: 6, kind: input, shape index: {}]
  %s7 = inlined_call_operand.vmem [shape: f32[12,16], index: 7, kind: input, shape index: {}]
  %s8 = inlined_call_operand.vmem [shape: f32[12,48], index: 8, kind: input, shape index: {}]
  %s9 = inlined_call_operand.vmem [shape: f32[12,48], index: 9, kind: input, shape index: {}]
  %s10 = inlined_call_operand.vmem [shape: f32[4,12], index: 10, kind: input, shape index: {}]
  %s11 = inlined_call_operand.vmem [shape: f32[16,8], index: 11, kind: input, shape index: {}]
  %s12 = inlined_call_operand.vmem [shape: f32[4,2], index: 12, kind: output, shape index: {}]
  %s13 = sld [smem:[#allocation0]]
  $region58: #{tpu_custom_call.1} parent=0
    _
  %s15 = ssub.s32 1, %s13
  %s16 = scalar_select 0, %s15, %s13
  // Predicated region
  $region2: #{tpu_custom_call.1} parent=0 // pred_check
    _
  $region3: #{tpu_custom_call.1} parent=0 // pred_check_branch
    %18 = sbr.rel (0) target = $region5
  $region4: #{tpu_custom_call.1} parent=0 // pred_region
    _
  $region5: #{tpu_custom_call.1} parent=0 // pred_fallthru
    _
  // Predicated region
  $region6: #{tpu_custom_call.1} parent=0 // pred_check
    _
  $region7: #{tpu_custom_call.1} parent=0 // pred_check_branch
    %20 = sbr.rel (0) target = $region9
  $region8: #{tpu_custom_call.1} parent=0 // pred_region
    _
  $region9: #{tpu_custom_call.1} parent=0 // pred_fallthru
    _
  // Predicated region
  $region10: #{tpu_custom_call.1} parent=0 // pred_check
    _
  $region11: #{tpu_custom_call.1} parent=0 // pred_check_branch
    %22 = sbr.rel (0) target = $region13
  $region12: #{tpu_custom_call.1} parent=0 // pred_region
    _
  $region13: #{tpu_custom_call.1} parent=0 // pred_fallthru
    _
  // Predicated region
  $region14: #{tpu_custom_call.1} parent=0 // pred_check
    _
  $region15: #{tpu_custom_call.1} parent=0 // pred_check_branch
    %24 = sbr.rel (0) target = $region17
  $region16: #{tpu_custom_call.1} parent=0 // pred_region
    _
  $region17: #{tpu_custom_call.1} parent=0 // pred_fallthru
    _
  // Predicated region
  $region18: #{tpu_custom_call.1} parent=0 // pred_check
    _
  $region19: #{tpu_custom_call.1} parent=0 // pred_check_branch
    %26 = sbr.rel (0) target = $region21
  $region20: #{tpu_custom_call.1} parent=0 // pred_region
    _
  $region21: #{tpu_custom_call.1} parent=0 // pred_fallthru
    _
  // Predicated region
  $region22: #{tpu_custom_call.1} parent=0 // pred_check
    _
  $region23: #{tpu_custom_call.1} parent=0 // pred_check_branch
    %28 = sbr.rel (0) target = $region25
  $region24: #{tpu_custom_call.1} parent=0 // pred_region
    _
  $region25: #{tpu_custom_call.1} parent=0 // pred_fallthru
    _
  // Predicated region
  $region26: #{tpu_custom_call.1} parent=0 // pred_check
    _
  $region27: #{tpu_custom_call.1} parent=0 // pred_check_branch
    %30 = sbr.rel (0) target = $region29
  $region28: #{tpu_custom_call.1} parent=0 // pred_region
    _
  $region29: #{tpu_custom_call.1} parent=0 // pred_fallthru
    _
  // Predicated region
  $region30: #{tpu_custom_call.1} parent=0 // pred_check
    _
  $region31: #{tpu_custom_call.1} parent=0 // pred_check_branch
    %32 = sbr.rel (0) target = $region33
  $region32: #{tpu_custom_call.1} parent=0 // pred_region
    _
  $region33: #{tpu_custom_call.1} parent=0 // pred_fallthru
    _
  // Predicated region
  $region34: #{tpu_custom_call.1} parent=0 // pred_check
    _
  $region35: #{tpu_custom_call.1} parent=0 // pred_check_branch
    %34 = sbr.rel (0) target = $region37
  $region36: #{tpu_custom_call.1} parent=0 // pred_region
    _
  $region37: #{tpu_custom_call.1} parent=0 // pred_fallthru
    _
  // Predicated region
  $region38: #{tpu_custom_call.1} parent=0 // pred_check
    _
  $region39: #{tpu_custom_call.1} parent=0 // pred_check_branch
    %36 = sbr.rel (0) target = $region41
  $region40: #{tpu_custom_call.1} parent=0 // pred_region
    _
  $region41: #{tpu_custom_call.1} parent=0 // pred_fallthru
    _
  // Predicated region
  $region42: #{tpu_custom_call.1} parent=0 // pred_check
    _
  $region43: #{tpu_custom_call.1} parent=0 // pred_check_branch
    %38 = sbr.rel (0) target = $region45
  $region44: #{tpu_custom_call.1} parent=0 // pred_region
    _
  $region45: #{tpu_custom_call.1} parent=0 // pred_fallthru
    _
  // Predicated region
  $region46: #{tpu_custom_call.1} parent=0 // pred_check
    _
  $region47: #{tpu_custom_call.1} parent=0 // pred_check_branch
    %40 = sbr.rel (0) target = $region49
  $region48: #{tpu_custom_call.1} parent=0 // pred_region
    _
  $region49: #{tpu_custom_call.1} parent=0 // pred_fallthru
    _
  %v41 = vld [vmem:[%s1] sm:$0xff]
  %v42 = vld [vmem:[%s1 + $0x8] sm:$0xff]
  %v43 = vld [vmem:[%s1 + $0x10] sm:$0xff]
  %v44 = vld [vmem:[%s1 + $0x18] sm:$0xff]
  %v45 = vld [vmem:[%s2] sm:$0xff]
  %v46 = vld [vmem:[%s2 + $0x8] sm:$0xff]
  %v47 = vld [vmem:[%s2 + $0x10] sm:$0xff]
  %v48 = vld [vmem:[%s2 + $0x18] sm:$0xff]
  %v49 = vld [vmem:[%s3] sm:$0xff]
  %v50 = vld [vmem:[%s3 + $0x8] sm:$0xff]
  %v51 = vld [vmem:[%s3 + $0x10] sm:$0xff]
  %v52 = vld [vmem:[%s3 + $0x18] sm:$0xff]
  %v53 = vld [vmem:[%s3 + $0x20] sm:$0xff]
  %v54 = vld [vmem:[%s3 + $0x28] sm:$0xff]
  %v55 = vld [vmem:[%s3 + $0x30] sm:$0xff]
  %v56 = vld [vmem:[%s3 + $0x38] sm:$0xff]
  %v57 = vld [vmem:[%s3 + $0x40] sm:$0xff]
  %v58 = vld [vmem:[%s3 + $0x48] sm:$0xff]
  %v59 = vld [vmem:[%s3 + $0x50] sm:$0xff]
  %v60 = vld [vmem:[%s3 + $0x58] sm:$0xff]
  %v61 = vld [vmem:[%s3 + $0x60] sm:$0xff]
  %v62 = vld [vmem:[%s3 + $0x68] sm:$0xff]
  %v63 = vld [vmem:[%s3 + $0x70] sm:$0xff]
  %v64 = vld [vmem:[%s3 + $0x78] sm:$0xff]
  %v65 = vld [vmem:[%s4] sm:$0xff]
  %v66 = vld [vmem:[%s4 + $0x8] sm:$0xff]
  %v67 = vld [vmem:[%s5] sm:$0xff]
  %v68 = vld [vmem:[%s5 + $0x8] sm:$0xf]
  %v69 = vld [vmem:[%s6] sm:$0xff]
  %v70 = vld [vmem:[%s6 + $0x8] sm:$0xf]
  %v71 = vld [vmem:[%s7] sm:$0xff]
  %v72 = vld [vmem:[%s7 + $0x8] sm:$0xf]
  %v73 = vld [vmem:[%s8] sm:$0xff]
  %v74 = vld [vmem:[%s8 + $0x8] sm:$0xf]
  %v75 = vld [vmem:[%s9] sm:$0xff]
  %v76 = vld [vmem:[%s9 + $0x8] sm:$0xf]
  %v77 = vld [vmem:[%s10] sm:$0xf]
  %v78 = vld [vmem:[%s11] sm:$0xff]
  %v79 = vld [vmem:[%s11 + $0x8] sm:$0xff]
  %v80 = vld [vmem:[%s0] sm:$0xff]
  %82 = vrot.lane.b32.xlu0 %v80, 15
  %v83 = vpop.permute.xlu0 %82
  %vm85 = vcmask 121856
  %v86 = vsel %vm85, 0.0, %v83
  %v87 = vsel %vm85, %v83, 0.0
  %90 = vrot.lane.b32.xlu0 %v86, 127
  %v91 = vpop.permute.xlu0 %90
  %92 = vrot.lane.b32.xlu0 %v87, 127
  %v93 = vpop.permute.xlu0 %92
  %vm94 = vcmask 1039360
  %v95 = vsel %vm94, %v91, %v93
  %97 = vrot.lane.b32.xlu0 %v86, 126
  %v98 = vpop.permute.xlu0 %97
  %99 = vrot.lane.b32.xlu0 %v87, 126
  %v100 = vpop.permute.xlu0 %99
  %vm101 = vcmask 1031168
  %v102 = vsel %vm101, %v98, %v100
  %104 = vrot.lane.b32.xlu0 %v86, 125
  %v105 = vpop.permute.xlu0 %104
  %106 = vrot.lane.b32.xlu0 %v87, 125
  %v107 = vpop.permute.xlu0 %106
  %vm108 = vcmask 1022976
  %v109 = vsel %vm108, %v105, %v107
  %111 = vrot.lane.b32.xlu0 %v86, 124
  %v112 = vpop.permute.xlu0 %111
  %113 = vrot.lane.b32.xlu0 %v87, 124
  %v114 = vpop.permute.xlu0 %113
  %vm115 = vcmask 1014784
  %v116 = vsel %vm115, %v112, %v114
  %118 = vrot.lane.b32.xlu0 %v86, 123
  %v119 = vpop.permute.xlu0 %118
  %120 = vrot.lane.b32.xlu0 %v87, 123
  %v121 = vpop.permute.xlu0 %120
  %vm122 = vcmask 1006592
  %v123 = vsel %vm122, %v119, %v121
  %125 = vrot.lane.b32.xlu0 %v86, 122
  %v126 = vpop.permute.xlu0 %125
  %127 = vrot.lane.b32.xlu0 %v87, 122
  %v128 = vpop.permute.xlu0 %127
  %vm129 = vcmask 998400
  %v130 = vsel %vm129, %v126, %v128
  %132 = vrot.lane.b32.xlu0 %v86, 121
  %v133 = vpop.permute.xlu0 %132
  %134 = vrot.lane.b32.xlu0 %v87, 121
  %v135 = vpop.permute.xlu0 %134
  %vm136 = vcmask 990208
  %v137 = vsel %vm136, %v133, %v135
  %139 = vrot.lane.b32.xlu0 %v86, 120
  %v140 = vpop.permute.xlu0 %139
  %141 = vrot.lane.b32.xlu0 %v87, 120
  %v142 = vpop.permute.xlu0 %141
  %vm143 = vcmask 982016
  %v144 = vsel %vm143, %v140, %v142
  %146 = vrot.lane.b32.xlu0 %v86, 119
  %v147 = vpop.permute.xlu0 %146
  %148 = vrot.lane.b32.xlu0 %v87, 119
  %v149 = vpop.permute.xlu0 %148
  %vm150 = vcmask 973824
  %v151 = vsel %vm150, %v147, %v149
  %153 = vrot.lane.b32.xlu0 %v86, 118
  %v154 = vpop.permute.xlu0 %153
  %155 = vrot.lane.b32.xlu0 %v87, 118
  %v156 = vpop.permute.xlu0 %155
  %vm157 = vcmask 965632
  %v158 = vsel %vm157, %v154, %v156
  %160 = vrot.lane.b32.xlu0 %v86, 117
  %v161 = vpop.permute.xlu0 %160
  %162 = vrot.lane.b32.xlu0 %v87, 117
  %v163 = vpop.permute.xlu0 %162
  %vm164 = vcmask 957440
  %v165 = vsel %vm164, %v161, %v163
  %167 = vrot.lane.b32.xlu0 %v86, 116
  %v168 = vpop.permute.xlu0 %167
  %169 = vrot.lane.b32.xlu0 %v87, 116
  %v170 = vpop.permute.xlu0 %169
  %vm171 = vcmask 949248
  %v172 = vsel %vm171, %v168, %v170
  %174 = vrot.lane.b32.xlu0 %v86, 115
  %v175 = vpop.permute.xlu0 %174
  %176 = vrot.lane.b32.xlu0 %v87, 115
  %v177 = vpop.permute.xlu0 %176
  %vm178 = vcmask 941056
  %v179 = vsel %vm178, %v175, %v177
  %181 = vrot.lane.b32.xlu0 %v86, 114
  %v182 = vpop.permute.xlu0 %181
  %183 = vrot.lane.b32.xlu0 %v87, 114
  %v184 = vpop.permute.xlu0 %183
  %vm185 = vcmask 932864
  %v186 = vsel %vm185, %v182, %v184
  %188 = vrot.lane.b32.xlu0 %v86, 113
  %v189 = vpop.permute.xlu0 %188
  %190 = vrot.lane.b32.xlu0 %v87, 113
  %v191 = vpop.permute.xlu0 %190
  %vm192 = vcmask 924672
  %v193 = vsel %vm192, %v189, %v191
  %195 = vrot.lane.b32.xlu0 %v86, 112
  %v196 = vpop.permute.xlu0 %195
  %197 = vrot.lane.b32.xlu0 %v87, 112
  %v198 = vpop.permute.xlu0 %197
  %199 = vrot.lane.b32.xlu0 %v95, 112
  %v200 = vpop.permute.xlu0 %199
  %201 = vrot.lane.b32.xlu0 %v93, 112
  %v202 = vpop.permute.xlu0 %201
  %203 = vrot.lane.b32.xlu0 %v102, 112
  %v204 = vpop.permute.xlu0 %203
  %205 = vrot.lane.b32.xlu0 %v100, 112
  %v206 = vpop.permute.xlu0 %205
  %207 = vrot.lane.b32.xlu0 %v109, 112
  %v208 = vpop.permute.xlu0 %207
  %209 = vrot.lane.b32.xlu0 %v107, 112
  %v210 = vpop.permute.xlu0 %209
  %211 = vrot.lane.b32.xlu0 %v116, 112
  %v212 = vpop.permute.xlu0 %211
  %213 = vrot.lane.b32.xlu0 %v114, 112
  %v214 = vpop.permute.xlu0 %213
  %215 = vrot.lane.b32.xlu0 %v123, 112
  %v216 = vpop.permute.xlu0 %215
  %217 = vrot.lane.b32.xlu0 %v121, 112
  %v218 = vpop.permute.xlu0 %217
  %219 = vrot.lane.b32.xlu0 %v130, 112
  %v220 = vpop.permute.xlu0 %219
  %221 = vrot.lane.b32.xlu0 %v128, 112
  %v222 = vpop.permute.xlu0 %221
  %223 = vrot.lane.b32.xlu0 %v137, 112
  %v224 = vpop.permute.xlu0 %223
  %225 = vrot.lane.b32.xlu0 %v135, 112
  %v226 = vpop.permute.xlu0 %225
  %227 = vrot.lane.b32.xlu0 %v144, 112
  %v228 = vpop.permute.xlu0 %227
  %229 = vrot.lane.b32.xlu0 %v142, 112
  %v230 = vpop.permute.xlu0 %229
  %231 = vrot.lane.b32.xlu0 %v151, 112
  %v232 = vpop.permute.xlu0 %231
  %233 = vrot.lane.b32.xlu0 %v149, 112
  %v234 = vpop.permute.xlu0 %233
  %235 = vrot.lane.b32.xlu0 %v158, 112
  %v236 = vpop.permute.xlu0 %235
  %237 = vrot.lane.b32.xlu0 %v156, 112
  %v238 = vpop.permute.xlu0 %237
  %239 = vrot.lane.b32.xlu0 %v165, 112
  %v240 = vpop.permute.xlu0 %239
  %241 = vrot.lane.b32.xlu0 %v163, 112
  %v242 = vpop.permute.xlu0 %241
  %243 = vrot.lane.b32.xlu0 %v172, 112
  %v244 = vpop.permute.xlu0 %243
  %245 = vrot.lane.b32.xlu0 %v170, 112
  %v246 = vpop.permute.xlu0 %245
  %247 = vrot.lane.b32.xlu0 %v179, 112
  %v248 = vpop.permute.xlu0 %247
  %249 = vrot.lane.b32.xlu0 %v177, 112
  %v250 = vpop.permute.xlu0 %249
  %251 = vrot.lane.b32.xlu0 %v186, 112
  %v252 = vpop.permute.xlu0 %251
  %253 = vrot.lane.b32.xlu0 %v184, 112
  %v254 = vpop.permute.xlu0 %253
  %255 = vrot.lane.b32.xlu0 %v193, 112
  %v256 = vpop.permute.xlu0 %255
  %257 = vrot.lane.b32.xlu0 %v191, 112
  %v258 = vpop.permute.xlu0 %257
  %vm259 = vcmask 916480
  %v260 = vsel %vm259, %v196, %v198
  %v261 = vsel %vm259, %v200, %v202
  %v262 = vsel %vm259, %v204, %v206
  %v263 = vsel %vm259, %v208, %v210
  %v264 = vsel %vm259, %v212, %v214
  %v265 = vsel %vm259, %v216, %v218
  %v266 = vsel %vm259, %v220, %v222
  %v267 = vsel %vm259, %v224, %v226
  %v268 = vsel %vm259, %v228, %v230
  %v269 = vsel %vm259, %v232, %v234
  %v270 = vsel %vm259, %v236, %v238
  %v271 = vsel %vm259, %v240, %v242
  %v272 = vsel %vm259, %v244, %v246
  %v273 = vsel %vm259, %v248, %v250
  %v274 = vsel %vm259, %v252, %v254
  %v275 = vsel %vm259, %v256, %v258
  %293 = vset.pattern.permute.xlu0 0
  %294 = vperm.xlu0 %293, %v78
  %v295 = vpop.permute.xlu0 %294
  %298 = vset.pattern.permute.xlu0 0
  %299 = vperm.xlu0 %298, %v79
  %v300 = vpop.permute.xlu0 %299
  %302 = vmatpush.msra.mxu0 %v193
  %303 = vmatpush.msra.mxu0 %v186
  %304 = vmatpush.msra.mxu0 %v179
  %305 = vmatpush.msra.mxu0 %v172
  %306 = vmatpush.msra.mxu0 %v165
  %307 = vmatpush.msra.mxu0 %v158
  %308 = vmatpush.msra.mxu0 %v151
  %309 = vmatpush.msra.mxu0 %v144
  %310 = vmatpush.msra.mxu0 %v137
  %311 = vmatpush.msra.mxu0 %v130
  %312 = vmatpush.msra.mxu0 %v123
  %313 = vmatpush.msra.mxu0 %v116
  %314 = vmatpush.msra.mxu0 %v109
  %315 = vmatpush.msra.mxu0 %v102
  %316 = vmatpush.msra.mxu0 %v95
  %317 = vmatpush.msra.mxu0 %v86
  %318 = vmatmul.f32.gmra.mxu0 %v41
  %v319 = vpop.f32.mrf.mxu0
  %v320 = vadd.f32 %v295, %v319
  %321 = vmatmul.f32.gmra.mxu0 %v43
  %v322 = vpop.f32.mrf.mxu0
  %v323 = vadd.f32 %v300, %v322
  %324 = vdwg.mxu0
  %325 = vmatpush.msra.mxu0 %v275
  %326 = vmatpush.msra.mxu0 %v274
  %327 = vmatpush.msra.mxu0 %v273
  %328 = vmatpush.msra.mxu0 %v272
  %329 = vmatpush.msra.mxu0 %v271
  %330 = vmatpush.msra.mxu0 %v270
  %331 = vmatpush.msra.mxu0 %v269
  %332 = vmatpush.msra.mxu0 %v268
  %333 = vmatpush.msra.mxu0 %v267
  %334 = vmatpush.msra.mxu0 %v266
  %335 = vmatpush.msra.mxu0 %v265
  %336 = vmatpush.msra.mxu0 %v264
  %337 = vmatpush.msra.mxu0 %v263
  %338 = vmatpush.msra.mxu0 %v262
  %339 = vmatpush.msra.mxu0 %v261
  %340 = vmatpush.msra.mxu0 %v260
  %341 = vmatmul.f32.gmra.mxu0 %v42
  %v342 = vpop.f32.mrf.mxu0
  %v343 = vadd.f32 %v320, %v342
  %344 = vmatmul.f32.gmra.mxu0 %v44
  %v345 = vpop.f32.mrf.mxu0
  %v346 = vadd.f32 %v323, %v345
  %347 = vdwg.mxu0
  %vm348 = vcmp.gt.f32.partialorder %v343, 0.0
  %vm349 = vcmp.gt.f32.partialorder %v346, 0.0
  %v350 = vmin.f32 %v343, 0.0
  %v351 = vmin.f32 %v346, 0.0
  %v352 = vmul.f32 %v350, 1.442695
  %v353 = vpow.pop %v352
  %v354 = vmul.f32 %v351, 1.442695
  %v355 = vpow.pop %v354
  %v356 = vsub.f32 %v353, 1.0
  %v357 = vsub.f32 %v355, 1.0
  %v358 = vsel %vm348, %v343, %v356
  %v359 = vsel %vm349, %v346, %v357
  %360 = vmatpush.msra.mxu0 %v64
  %361 = vmatpush.msra.mxu0 %v63
  %362 = vmatpush.msra.mxu0 %v62
  %363 = vmatpush.msra.mxu0 %v61
  %364 = vmatpush.msra.mxu0 %v60
  %365 = vmatpush.msra.mxu0 %v59
  %366 = vmatpush.msra.mxu0 %v58
  %367 = vmatpush.msra.mxu0 %v57
  %368 = vmatpush.msra.mxu0 %v56
  %369 = vmatpush.msra.mxu0 %v55
  %370 = vmatpush.msra.mxu0 %v54
  %371 = vmatpush.msra.mxu0 %v53
  %372 = vmatpush.msra.mxu0 %v52
  %373 = vmatpush.msra.mxu0 %v51
  %374 = vmatpush.msra.mxu0 %v50
  %375 = vmatpush.msra.mxu0 %v49
  %376 = vmatmul.f32.gmra.mxu0 %v358
  %v377 = vpop.f32.mrf.mxu0
  %v378 = vadd.f32 0.0, %v377
  %379 = vmatmul.f32.gmra.mxu0 %v359
  %v380 = vpop.f32.mrf.mxu0
  %v381 = vadd.f32 0.0, %v380
  %382 = vdwg.mxu0
  %385 = vrot.lane.b32.xlu0 %v378, 7
  %v386 = vpop.permute.xlu0 %385
  %387 = vrot.lane.b32.xlu0 %v381, 7
  %v388 = vpop.permute.xlu0 %387
  %vm391 = vcmask 56320
  %v392 = vsel %vm391, 0.0, %v386
  %v393 = vsel %vm391, 0.0, %v388
  %vm394 = vcmask 187392
  %v395 = vsel %vm394, %v392, 0.0
  %v396 = vsel %vm394, %v393, 0.0
  %399 = vrot.lane.b32.xlu0 %v395, 127
  %v400 = vpop.permute.xlu0 %399
  %401 = vrot.lane.b32.xlu0 %v396, 127
  %v402 = vpop.permute.xlu0 %401
  %405 = vrot.lane.b32.xlu0 %v395, 126
  %v406 = vpop.permute.xlu0 %405
  %407 = vrot.lane.b32.xlu0 %v396, 126
  %v408 = vpop.permute.xlu0 %407
  %411 = vrot.lane.b32.xlu0 %v395, 125
  %v412 = vpop.permute.xlu0 %411
  %413 = vrot.lane.b32.xlu0 %v396, 125
  %v414 = vpop.permute.xlu0 %413
  %417 = vrot.lane.b32.xlu0 %v395, 124
  %v418 = vpop.permute.xlu0 %417
  %419 = vrot.lane.b32.xlu0 %v396, 124
  %v420 = vpop.permute.xlu0 %419
  %423 = vrot.lane.b32.xlu0 %v395, 123
  %v424 = vpop.permute.xlu0 %423
  %425 = vrot.lane.b32.xlu0 %v396, 123
  %v426 = vpop.permute.xlu0 %425
  %429 = vrot.lane.b32.xlu0 %v395, 122
  %v430 = vpop.permute.xlu0 %429
  %431 = vrot.lane.b32.xlu0 %v396, 122
  %v432 = vpop.permute.xlu0 %431
  %435 = vrot.lane.b32.xlu0 %v395, 121
  %v436 = vpop.permute.xlu0 %435
  %437 = vrot.lane.b32.xlu0 %v396, 121
  %v438 = vpop.permute.xlu0 %437
  %441 = vrot.lane.b32.xlu0 %v395, 120
  %v442 = vpop.permute.xlu0 %441
  %443 = vrot.lane.b32.xlu0 %v396, 120
  %v444 = vpop.permute.xlu0 %443
  %447 = vrot.lane.b32.xlu0 %v395, 119
  %v448 = vpop.permute.xlu0 %447
  %449 = vrot.lane.b32.xlu0 %v396, 119
  %v450 = vpop.permute.xlu0 %449
  %453 = vrot.lane.b32.xlu0 %v395, 118
  %v454 = vpop.permute.xlu0 %453
  %455 = vrot.lane.b32.xlu0 %v396, 118
  %v456 = vpop.permute.xlu0 %455
  %459 = vrot.lane.b32.xlu0 %v395, 117
  %v460 = vpop.permute.xlu0 %459
  %461 = vrot.lane.b32.xlu0 %v396, 117
  %v462 = vpop.permute.xlu0 %461
  %465 = vrot.lane.b32.xlu0 %v395, 116
  %v466 = vpop.permute.xlu0 %465
  %467 = vrot.lane.b32.xlu0 %v396, 116
  %v468 = vpop.permute.xlu0 %467
  %471 = vrot.lane.b32.xlu0 %v395, 115
  %v472 = vpop.permute.xlu0 %471
  %473 = vrot.lane.b32.xlu0 %v396, 115
  %v474 = vpop.permute.xlu0 %473
  %477 = vrot.lane.b32.xlu0 %v395, 114
  %v478 = vpop.permute.xlu0 %477
  %479 = vrot.lane.b32.xlu0 %v396, 114
  %v480 = vpop.permute.xlu0 %479
  %483 = vrot.lane.b32.xlu0 %v395, 113
  %v484 = vpop.permute.xlu0 %483
  %485 = vrot.lane.b32.xlu0 %v396, 113
  %v486 = vpop.permute.xlu0 %485
  %489 = vset.pattern.permute.xlu0 1
  %490 = vperm.xlu0 %489, %v78
  %v491 = vpop.permute.xlu0 %490
  %493 = vset.pattern.permute.xlu0 1
  %494 = vperm.xlu0 %493, %v79
  %v495 = vpop.permute.xlu0 %494
  %497 = vmatpush.msra.mxu0 %v438
  %498 = vmatpush.msra.mxu0 %v436
  %499 = vmatpush.msra.mxu0 %v432
  %500 = vmatpush.msra.mxu0 %v430
  %501 = vmatpush.msra.mxu0 %v426
  %502 = vmatpush.msra.mxu0 %v424
  %503 = vmatpush.msra.mxu0 %v420
  %504 = vmatpush.msra.mxu0 %v418
  %505 = vmatpush.msra.mxu0 %v414
  %506 = vmatpush.msra.mxu0 %v412
  %507 = vmatpush.msra.mxu0 %v408
  %508 = vmatpush.msra.mxu0 %v406
  %509 = vmatpush.msra.mxu0 %v402
  %510 = vmatpush.msra.mxu0 %v400
  %511 = vmatpush.msra.mxu0 %v396
  %512 = vmatpush.msra.mxu0 %v395
  %513 = vmatmul.f32.gmra.mxu0 %v45
  %v514 = vpop.f32.mrf.mxu0
  %v515 = vadd.f32 %v491, %v514
  %516 = vmatmul.f32.gmra.mxu0 %v47
  %v517 = vpop.f32.mrf.mxu0
  %v518 = vadd.f32 %v495, %v517
  %519 = vdwg.mxu0
  %520 = vmatpush.msra.mxu0 %v486
  %521 = vmatpush.msra.mxu0 %v484
  %522 = vmatpush.msra.mxu0 %v480
  %523 = vmatpush.msra.mxu0 %v478
  %524 = vmatpush.msra.mxu0 %v474
  %525 = vmatpush.msra.mxu0 %v472
  %526 = vmatpush.msra.mxu0 %v468
  %527 = vmatpush.msra.mxu0 %v466
  %528 = vmatpush.msra.mxu0 %v462
  %529 = vmatpush.msra.mxu0 %v460
  %530 = vmatpush.msra.mxu0 %v456
  %531 = vmatpush.msra.mxu0 %v454
  %532 = vmatpush.msra.mxu0 %v450
  %533 = vmatpush.msra.mxu0 %v448
  %534 = vmatpush.msra.mxu0 %v444
  %535 = vmatpush.msra.mxu0 %v442
  %536 = vmatmul.f32.gmra.mxu0 %v46
  %v537 = vpop.f32.mrf.mxu0
  %v538 = vadd.f32 %v515, %v537
  %539 = vmatmul.f32.gmra.mxu0 %v48
  %v540 = vpop.f32.mrf.mxu0
  %v541 = vadd.f32 %v518, %v540
  %542 = vdwg.mxu0
  %vm543 = vcmp.gt.f32.partialorder %v538, 0.0
  %vm544 = vcmp.gt.f32.partialorder %v541, 0.0
  %v545 = vmin.f32 %v538, 0.0
  %v546 = vmin.f32 %v541, 0.0
  %v547 = vmul.f32 %v545, 1.442695
  %v548 = vpow.pop %v547
  %v549 = vmul.f32 %v546, 1.442695
  %v550 = vpow.pop %v549
  %v551 = vsub.f32 %v548, 1.0
  %v552 = vsub.f32 %v550, 1.0
  %v553 = vsel %vm543, %v538, %v551
  %v554 = vsel %vm544, %v541, %v552
  %vm555 = vcmask 130048
  %v557 = vsel %vm555, %v553, 0
  %v560 = vsel %vm555, %v554, 0
  %562 = vmatpush.msra.mxu0 0.0
  %563 = vmatpush.msra.mxu0 0.0
  %564 = vmatpush.msra.mxu0 0.0
  %565 = vmatpush.msra.mxu0 0.0
  %566 = vmatpush.msra.mxu0 0.0
  %567 = vmatpush.msra.mxu0 0.0
  %568 = vmatpush.msra.mxu0 0.0
  %569 = vmatpush.msra.mxu0 0.0
  %570 = vmatpush.msra.mxu0 0.0
  %571 = vmatpush.msra.mxu0 0.0
  %572 = vmatpush.msra.mxu0 0.0
  %573 = vmatpush.msra.mxu0 0.0
  %574 = vmatpush.msra.mxu0 0.0
  %575 = vmatpush.msra.mxu0 0.0
  %576 = vmatpush.msra.mxu0 %v66
  %577 = vmatpush.msra.mxu0 %v65
  %578 = vmatmul.f32.gmra.mxu0 %v557
  %v579 = vpop.f32.mrf.mxu0
  %v580 = vadd.f32 0.0, %v579
  %581 = vmatmul.f32.gmra.mxu0 %v560
  %v582 = vpop.f32.mrf.mxu0
  %v583 = vadd.f32 0.0, %v582
  %584 = vdwg.mxu0
  %585 = vset.pattern.permute.xlu0 4
  %586 = vperm.xlu0 %585, %v78
  %v587 = vpop.permute.xlu0 %586
  %589 = vset.pattern.permute.xlu0 4
  %590 = vperm.xlu0 %589, %v79
  %v591 = vpop.permute.xlu0 %590
  %v594 = vsel %vm555, %v71, 0
  %v597 = vsel %vm555, %v72, 0
  %599 = vmatpush.msra.mxu0 0.0
  %600 = vmatpush.msra.mxu0 0.0
  %601 = vmatpush.msra.mxu0 0.0
  %602 = vmatpush.msra.mxu0 0.0
  %603 = vmatpush.msra.mxu0 0.0
  %604 = vmatpush.msra.mxu0 0.0
  %605 = vmatpush.msra.mxu0 0.0
  %606 = vmatpush.msra.mxu0 0.0
  %607 = vmatpush.msra.mxu0 0.0
  %608 = vmatpush.msra.mxu0 0.0
  %609 = vmatpush.msra.mxu0 0.0
  %610 = vmatpush.msra.mxu0 0.0
  %611 = vmatpush.msra.mxu0 0.0
  %612 = vmatpush.msra.mxu0 0.0
  %613 = vmatpush.msra.mxu0 %v583
  %614 = vmatpush.msra.mxu0 %v580
  %615 = vmatmul.f32.gmra.mxu0 %v594
  %v616 = vpop.f32.mrf.mxu0
  %v617 = vadd.f32 %v587, %v616
  %618 = vmatmul.f32.gmra.mxu0 %v597
  %v619 = vpop.f32.mrf.mxu0
  %v620 = vadd.f32 %v591, %v619
  %621 = vdwg.mxu0
  %624 = vrot.lane.b32.xlu0 %v580, 3
  %v625 = vpop.permute.xlu0 %624
  %626 = vrot.lane.b32.xlu0 %v583, 3
  %v627 = vpop.permute.xlu0 %626
  %vm630 = vcmask 23552
  %v631 = vsel %vm630, 0.0, %v625
  %v632 = vsel %vm630, 0.0, %v627
  %635 = vrot.lane.b32.xlu0 %v631, 127
  %v636 = vpop.permute.xlu0 %635
  %637 = vrot.lane.b32.xlu0 %v632, 127
  %v638 = vpop.permute.xlu0 %637
  %641 = vrot.lane.b32.xlu0 %v631, 126
  %v642 = vpop.permute.xlu0 %641
  %643 = vrot.lane.b32.xlu0 %v632, 126
  %v644 = vpop.permute.xlu0 %643
  %647 = vrot.lane.b32.xlu0 %v631, 125
  %v648 = vpop.permute.xlu0 %647
  %649 = vrot.lane.b32.xlu0 %v632, 125
  %v650 = vpop.permute.xlu0 %649
  %653 = vset.pattern.permute.xlu0 2
  %654 = vperm.xlu0 %653, %v78
  %v655 = vpop.permute.xlu0 %654
  %657 = vset.pattern.permute.xlu0 2
  %658 = vperm.xlu0 %657, %v79
  %v659 = vpop.permute.xlu0 %658
  %vm661 = vcmask 523264
  %v663 = vsel %vm661, %v67, 0
  %v666 = vsel %vm661, %v68, 0
  %668 = vmatpush.msra.mxu0 0.0
  %669 = vmatpush.msra.mxu0 0.0
  %670 = vmatpush.msra.mxu0 0.0
  %671 = vmatpush.msra.mxu0 0.0
  %672 = vmatpush.msra.mxu0 0.0
  %673 = vmatpush.msra.mxu0 0.0
  %674 = vmatpush.msra.mxu0 0.0
  %675 = vmatpush.msra.mxu0 0.0
  %676 = vmatpush.msra.mxu0 %v650
  %677 = vmatpush.msra.mxu0 %v648
  %678 = vmatpush.msra.mxu0 %v644
  %679 = vmatpush.msra.mxu0 %v642
  %680 = vmatpush.msra.mxu0 %v638
  %681 = vmatpush.msra.mxu0 %v636
  %682 = vmatpush.msra.mxu0 %v632
  %683 = vmatpush.msra.mxu0 %v631
  %684 = vmatmul.f32.gmra.mxu0 %v663
  %v685 = vpop.f32.mrf.mxu0
  %v686 = vadd.f32 %v655, %v685
  %687 = vmatmul.f32.gmra.mxu0 %v666
  %v688 = vpop.f32.mrf.mxu0
  %v689 = vadd.f32 %v659, %v688
  %690 = vdwg.mxu0
  %v691 = vmax.f32 %v686, 0.0
  %v692 = vmax.f32 %v689, 0.0
  %695 = vrot.lane.b32.xlu0 %v691, 3
  %v696 = vpop.permute.xlu0 %695
  %697 = vrot.lane.b32.xlu0 %v692, 3
  %v698 = vpop.permute.xlu0 %697
  %v701 = vsel %vm630, 0.0, %v696
  %v702 = vsel %vm630, 0.0, %v698
  %vm705 = vcmask 1043456
  %v706 = vrot.slane %v701, 4
  %v707 = vrot.slane %v702, 4
  %v708 = vsel %vm705, %v706, %v707
  %709 = vrot.lane.b32.xlu0 %v706, 127
  %v710 = vpop.permute.xlu0 %709
  %711 = vrot.lane.b32.xlu0 %v708, 127
  %v712 = vpop.permute.xlu0 %711
  %715 = vrot.lane.b32.xlu0 %v701, 126
  %v716 = vpop.permute.xlu0 %715
  %717 = vrot.lane.b32.xlu0 %v702, 126
  %v718 = vpop.permute.xlu0 %717
  %721 = vrot.lane.b32.xlu0 %v706, 125
  %v722 = vpop.permute.xlu0 %721
  %723 = vrot.lane.b32.xlu0 %v708, 125
  %v724 = vpop.permute.xlu0 %723
  %v727 = vsel %vm705, %v702, %v710
  %v728 = vsel %vm705, %v718, %v722
  %729 = vset.pattern.permute.xlu0 3
  %730 = vperm.xlu0 %729, %v78
  %v731 = vpop.permute.xlu0 %730
  %733 = vset.pattern.permute.xlu0 3
  %734 = vperm.xlu0 %733, %v79
  %v735 = vpop.permute.xlu0 %734
  %vm737 = vcmask 392192
  %v739 = vsel %vm737, %v69, 0
  %v742 = vsel %vm737, %v70, 0
  %744 = vmatpush.msra.mxu0 0.0
  %745 = vmatpush.msra.mxu0 0.0
  %746 = vmatpush.msra.mxu0 0.0
  %747 = vmatpush.msra.mxu0 0.0
  %748 = vmatpush.msra.mxu0 0.0
  %749 = vmatpush.msra.mxu0 0.0
  %750 = vmatpush.msra.mxu0 0.0
  %751 = vmatpush.msra.mxu0 0.0
  %752 = vmatpush.msra.mxu0 0.0
  %753 = vmatpush.msra.mxu0 0.0
  %754 = vmatpush.msra.mxu0 %v724
  %755 = vmatpush.msra.mxu0 %v728
  %756 = vmatpush.msra.mxu0 %v716
  %757 = vmatpush.msra.mxu0 %v712
  %758 = vmatpush.msra.mxu0 %v727
  %759 = vmatpush.msra.mxu0 %v701
  %760 = vmatmul.f32.gmra.mxu0 %v739
  %v761 = vpop.f32.mrf.mxu0
  %v762 = vadd.f32 %v731, %v761
  %763 = vmatmul.f32.gmra.mxu0 %v742
  %v764 = vpop.f32.mrf.mxu0
  %v765 = vadd.f32 %v735, %v764
  %766 = vdwg.mxu0
  %v767 = vmax.f32 %v762, 0.0
  %v768 = vmax.f32 %v765, 0.0
  %v769 = vadd.f32 %v767, %v617
  %v770 = vadd.f32 %v768, %v620
  %v771 = vmax.f32 %v769, 0.0
  %v772 = vmax.f32 %v770, 0.0
  %775 = vrot.lane.b32.xlu0 %v771, 6
  %v776 = vpop.permute.xlu0 %775
  %777 = vrot.lane.b32.xlu0 %v772, 6
  %v778 = vpop.permute.xlu0 %777
  %vm781 = vcmask 48128
  %v782 = vsel %vm781, 0.0, %v776
  %v783 = vsel %vm781, 0.0, %v778
  %v786 = vrot.slane %v782, 4
  %v787 = vrot.slane %v783, 4
  %v788 = vsel %vm705, %v786, %v787
  %789 = vrot.lane.b32.xlu0 %v786, 126
  %v790 = vpop.permute.xlu0 %789
  %791 = vrot.lane.b32.xlu0 %v788, 126
  %v792 = vpop.permute.xlu0 %791
  %795 = vrot.lane.b32.xlu0 %v782, 124
  %v796 = vpop.permute.xlu0 %795
  %797 = vrot.lane.b32.xlu0 %v783, 124
  %v798 = vpop.permute.xlu0 %797
  %801 = vrot.lane.b32.xlu0 %v786, 122
  %v802 = vpop.permute.xlu0 %801
  %803 = vrot.lane.b32.xlu0 %v788, 122
  %v804 = vpop.permute.xlu0 %803
  %v807 = vsel %vm705, %v783, %v790
  %v808 = vsel %vm705, %v798, %v802
  %809 = vset.pattern.permute.xlu0 5
  %810 = vperm.xlu0 %809, %v78
  %v811 = vpop.permute.xlu0 %810
  %813 = vset.pattern.permute.xlu0 5
  %814 = vperm.xlu0 %813, %v79
  %v815 = vpop.permute.xlu0 %814
  %v818 = vsel %vm737, %v73, 0
  %v821 = vsel %vm737, %v74, 0
  %823 = vmatpush.msra.mxu0 0.0
  %824 = vmatpush.msra.mxu0 0.0
  %825 = vmatpush.msra.mxu0 0.0
  %826 = vmatpush.msra.mxu0 0.0
  %827 = vmatpush.msra.mxu0 0.0
  %828 = vmatpush.msra.mxu0 0.0
  %829 = vmatpush.msra.mxu0 0.0
  %830 = vmatpush.msra.mxu0 0.0
  %831 = vmatpush.msra.mxu0 0.0
  %832 = vmatpush.msra.mxu0 0.0
  %833 = vmatpush.msra.mxu0 %v804
  %834 = vmatpush.msra.mxu0 %v808
  %835 = vmatpush.msra.mxu0 %v796
  %836 = vmatpush.msra.mxu0 %v792
  %837 = vmatpush.msra.mxu0 %v807
  %838 = vmatpush.msra.mxu0 %v782
  %839 = vmatmul.f32.gmra.mxu0 %v818
  %v840 = vpop.f32.mrf.mxu0
  %v841 = vadd.f32 %v811, %v840
  %842 = vmatmul.f32.gmra.mxu0 %v821
  %v843 = vpop.f32.mrf.mxu0
  %v844 = vadd.f32 %v815, %v843
  %845 = vdwg.mxu0
  %v846 = vmax.f32 %v841, 0.0
  %v847 = vmax.f32 %v844, 0.0
  %850 = vrot.lane.b32.xlu0 %v846, 6
  %v851 = vpop.permute.xlu0 %850
  %852 = vrot.lane.b32.xlu0 %v847, 6
  %v853 = vpop.permute.xlu0 %852
  %v856 = vsel %vm781, 0.0, %v851
  %v857 = vsel %vm781, 0.0, %v853
  %v860 = vrot.slane %v856, 4
  %v861 = vrot.slane %v857, 4
  %v862 = vsel %vm705, %v860, %v861
  %863 = vrot.lane.b32.xlu0 %v860, 126
  %v864 = vpop.permute.xlu0 %863
  %865 = vrot.lane.b32.xlu0 %v862, 126
  %v866 = vpop.permute.xlu0 %865
  %869 = vrot.lane.b32.xlu0 %v856, 124
  %v870 = vpop.permute.xlu0 %869
  %871 = vrot.lane.b32.xlu0 %v857, 124
  %v872 = vpop.permute.xlu0 %871
  %875 = vrot.lane.b32.xlu0 %v860, 122
  %v876 = vpop.permute.xlu0 %875
  %877 = vrot.lane.b32.xlu0 %v862, 122
  %v878 = vpop.permute.xlu0 %877
  %v881 = vsel %vm705, %v857, %v864
  %v882 = vsel %vm705, %v872, %v876
  %883 = vset.pattern.permute.xlu0 6
  %884 = vperm.xlu0 %883, %v78
  %v885 = vpop.permute.xlu0 %884
  %887 = vset.pattern.permute.xlu0 6
  %888 = vperm.xlu0 %887, %v79
  %v889 = vpop.permute.xlu0 %888
  %v892 = vsel %vm737, %v75, 0
  %v895 = vsel %vm737, %v76, 0
  %897 = vmatpush.msra.mxu0 0.0
  %898 = vmatpush.msra.mxu0 0.0
  %899 = vmatpush.msra.mxu0 0.0
  %900 = vmatpush.msra.mxu0 0.0
  %901 = vmatpush.msra.mxu0 0.0
  %902 = vmatpush.msra.mxu0 0.0
  %903 = vmatpush.msra.mxu0 0.0
  %904 = vmatpush.msra.mxu0 0.0
  %905 = vmatpush.msra.mxu0 0.0
  %906 = vmatpush.msra.mxu0 0.0
  %907 = vmatpush.msra.mxu0 %v878
  %908 = vmatpush.msra.mxu0 %v882
  %909 = vmatpush.msra.mxu0 %v870
  %910 = vmatpush.msra.mxu0 %v866
  %911 = vmatpush.msra.mxu0 %v881
  %912 = vmatpush.msra.mxu0 %v856
  %913 = vmatmul.f32.gmra.mxu0 %v892
  %v914 = vpop.f32.mrf.mxu0
  %v915 = vadd.f32 %v885, %v914
  %916 = vmatmul.f32.gmra.mxu0 %v895
  %v917 = vpop.f32.mrf.mxu0
  %v918 = vadd.f32 %v889, %v917
  %919 = vdwg.mxu0
  %v920 = vmax.f32 %v915, 0.0
  %v921 = vmax.f32 %v918, 0.0
  %v922 = vadd.f32 %v920, %v771
  %v923 = vadd.f32 %v921, %v772
  %v924 = vmax.f32 %v922, 0.0
  %v925 = vmax.f32 %v923, 0.0
  %928 = vrot.lane.b32.xlu0 %v924, 127
  %v929 = vpop.permute.xlu0 %928
  %930 = vrot.lane.b32.xlu0 %v925, 127
  %v931 = vpop.permute.xlu0 %930
  %933 = vrot.lane.b32.xlu0 %v78, 121
  %v934 = vpop.permute.xlu0 %933
  %vm936 = vcmask 97280
  %v938 = vsel %vm936, %v77, 0
  %v940 = vsel %vm705, %v931, 0
  %942 = vmatpush.msra.mxu0 0.0
  %943 = vmatpush.msra.mxu0 0.0
  %944 = vmatpush.msra.mxu0 0.0
  %945 = vmatpush.msra.mxu0 0.0
  %946 = vmatpush.msra.mxu0 0.0
  %947 = vmatpush.msra.mxu0 0.0
  %948 = vmatpush.msra.mxu0 0.0
  %949 = vmatpush.msra.mxu0 0.0
  %950 = vmatpush.msra.mxu0 0.0
  %951 = vmatpush.msra.mxu0 0.0
  %952 = vmatpush.msra.mxu0 0.0
  %953 = vmatpush.msra.mxu0 0.0
  %954 = vmatpush.msra.mxu0 0.0
  %955 = vmatpush.msra.mxu0 0.0
  %956 = vmatpush.msra.mxu0 %v940
  %957 = vmatpush.msra.mxu0 %v929
  %958 = vmatmul.f32.gmra.mxu0 %v938
  %v959 = vpop.f32.mrf.mxu0
  %v960 = vadd.f32 %v934, %v959
  %961 = vdwg.mxu0
  %vm962 = vcmask 3072
  %963 = vst.msk [vmem:[%s12] sm:$0xf] %vm962, %v960
  %s964 = scalar_lea.vmem %s0, 8
  %v965 = vld [vmem:[%s964] sm:$0xff]
  %967 = vrot.lane.b32.xlu0 %v965, 15
  %v968 = vpop.permute.xlu0 %967
  %v970 = vsel %vm85, 0.0, %v968
  %v971 = vsel %vm85, %v968, 0.0
  %974 = vrot.lane.b32.xlu0 %v970, 127
  %v975 = vpop.permute.xlu0 %974
  %976 = vrot.lane.b32.xlu0 %v971, 127
  %v977 = vpop.permute.xlu0 %976
  %v978 = vsel %vm94, %v975, %v977
  %980 = vrot.lane.b32.xlu0 %v970, 126
  %v981 = vpop.permute.xlu0 %980
  %982 = vrot.lane.b32.xlu0 %v971, 126
  %v983 = vpop.permute.xlu0 %982
  %v984 = vsel %vm101, %v981, %v983
  %986 = vrot.lane.b32.xlu0 %v970, 125
  %v987 = vpop.permute.xlu0 %986
  %988 = vrot.lane.b32.xlu0 %v971, 125
  %v989 = vpop.permute.xlu0 %988
  %v990 = vsel %vm108, %v987, %v989
  %992 = vrot.lane.b32.xlu0 %v970, 124
  %v993 = vpop.permute.xlu0 %992
  %994 = vrot.lane.b32.xlu0 %v971, 124
  %v995 = vpop.permute.xlu0 %994
  %v996 = vsel %vm115, %v993, %v995
  %998 = vrot.lane.b32.xlu0 %v970, 123
  %v999 = vpop.permute.xlu0 %998
  %1000 = vrot.lane.b32.xlu0 %v971, 123
  %v1001 = vpop.permute.xlu0 %1000
  %v1002 = vsel %vm122, %v999, %v1001
  %1004 = vrot.lane.b32.xlu0 %v970, 122
  %v1005 = vpop.permute.xlu0 %1004
  %1006 = vrot.lane.b32.xlu0 %v971, 122
  %v1007 = vpop.permute.xlu0 %1006
  %v1008 = vsel %vm129, %v1005, %v1007
  %1010 = vrot.lane.b32.xlu0 %v970, 121
  %v1011 = vpop.permute.xlu0 %1010
  %1012 = vrot.lane.b32.xlu0 %v971, 121
  %v1013 = vpop.permute.xlu0 %1012
  %v1014 = vsel %vm136, %v1011, %v1013
  %1016 = vrot.lane.b32.xlu0 %v970, 120
  %v1017 = vpop.permute.xlu0 %1016
  %1018 = vrot.lane.b32.xlu0 %v971, 120
  %v1019 = vpop.permute.xlu0 %1018
  %v1020 = vsel %vm143, %v1017, %v1019
  %1022 = vrot.lane.b32.xlu0 %v970, 119
  %v1023 = vpop.permute.xlu0 %1022
  %1024 = vrot.lane.b32.xlu0 %v971, 119
  %v1025 = vpop.permute.xlu0 %1024
  %v1026 = vsel %vm150, %v1023, %v1025
  %1028 = vrot.lane.b32.xlu0 %v970, 118
  %v1029 = vpop.permute.xlu0 %1028
  %1030 = vrot.lane.b32.xlu0 %v971, 118
  %v1031 = vpop.permute.xlu0 %1030
  %v1032 = vsel %vm157, %v1029, %v1031
  %1034 = vrot.lane.b32.xlu0 %v970, 117
  %v1035 = vpop.permute.xlu0 %1034
  %1036 = vrot.lane.b32.xlu0 %v971, 117
  %v1037 = vpop.permute.xlu0 %1036
  %v1038 = vsel %vm164, %v1035, %v1037
  %1040 = vrot.lane.b32.xlu0 %v970, 116
  %v1041 = vpop.permute.xlu0 %1040
  %1042 = vrot.lane.b32.xlu0 %v971, 116
  %v1043 = vpop.permute.xlu0 %1042
  %v1044 = vsel %vm171, %v1041, %v1043
  %1046 = vrot.lane.b32.xlu0 %v970, 115
  %v1047 = vpop.permute.xlu0 %1046
  %1048 = vrot.lane.b32.xlu0 %v971, 115
  %v1049 = vpop.permute.xlu0 %1048
  %v1050 = vsel %vm178, %v1047, %v1049
  %1052 = vrot.lane.b32.xlu0 %v970, 114
  %v1053 = vpop.permute.xlu0 %1052
  %1054 = vrot.lane.b32.xlu0 %v971, 114
  %v1055 = vpop.permute.xlu0 %1054
  %v1056 = vsel %vm185, %v1053, %v1055
  %1058 = vrot.lane.b32.xlu0 %v970, 113
  %v1059 = vpop.permute.xlu0 %1058
  %1060 = vrot.lane.b32.xlu0 %v971, 113
  %v1061 = vpop.permute.xlu0 %1060
  %v1062 = vsel %vm192, %v1059, %v1061
  %1064 = vrot.lane.b32.xlu0 %v970, 112
  %v1065 = vpop.permute.xlu0 %1064
  %1066 = vrot.lane.b32.xlu0 %v971, 112
  %v1067 = vpop.permute.xlu0 %1066
  %1068 = vrot.lane.b32.xlu0 %v978, 112
  %v1069 = vpop.permute.xlu0 %1068
  %1070 = vrot.lane.b32.xlu0 %v977, 112
  %v1071 = vpop.permute.xlu0 %1070
  %1072 = vrot.lane.b32.xlu0 %v984, 112
  %v1073 = vpop.permute.xlu0 %1072
  %1074 = vrot.lane.b32.xlu0 %v983, 112
  %v1075 = vpop.permute.xlu0 %1074
  %1076 = vrot.lane.b32.xlu0 %v990, 112
  %v1077 = vpop.permute.xlu0 %1076
  %1078 = vrot.lane.b32.xlu0 %v989, 112
  %v1079 = vpop.permute.xlu0 %1078
  %1080 = vrot.lane.b32.xlu0 %v996, 112
  %v1081 = vpop.permute.xlu0 %1080
  %1082 = vrot.lane.b32.xlu0 %v995, 112
  %v1083 = vpop.permute.xlu0 %1082
  %1084 = vrot.lane.b32.xlu0 %v1002, 112
  %v1085 = vpop.permute.xlu0 %1084
  %1086 = vrot.lane.b32.xlu0 %v1001, 112
  %v1087 = vpop.permute.xlu0 %1086
  %1088 = vrot.lane.b32.xlu0 %v1008, 112
  %v1089 = vpop.permute.xlu0 %1088
  %1090 = vrot.lane.b32.xlu0 %v1007, 112
  %v1091 = vpop.permute.xlu0 %1090
  %1092 = vrot.lane.b32.xlu0 %v1014, 112
  %v1093 = vpop.permute.xlu0 %1092
  %1094 = vrot.lane.b32.xlu0 %v1013, 112
  %v1095 = vpop.permute.xlu0 %1094
  %1096 = vrot.lane.b32.xlu0 %v1020, 112
  %v1097 = vpop.permute.xlu0 %1096
  %1098 = vrot.lane.b32.xlu0 %v1019, 112
  %v1099 = vpop.permute.xlu0 %1098
  %1100 = vrot.lane.b32.xlu0 %v1026, 112
  %v1101 = vpop.permute.xlu0 %1100
  %1102 = vrot.lane.b32.xlu0 %v1025, 112
  %v1103 = vpop.permute.xlu0 %1102
  %1104 = vrot.lane.b32.xlu0 %v1032, 112
  %v1105 = vpop.permute.xlu0 %1104
  %1106 = vrot.lane.b32.xlu0 %v1031, 112
  %v1107 = vpop.permute.xlu0 %1106
  %1108 = vrot.lane.b32.xlu0 %v1038, 112
  %v1109 = vpop.permute.xlu0 %1108
  %1110 = vrot.lane.b32.xlu0 %v1037, 112
  %v1111 = vpop.permute.xlu0 %1110
  %1112 = vrot.lane.b32.xlu0 %v1044, 112
  %v1113 = vpop.permute.xlu0 %1112
  %1114 = vrot.lane.b32.xlu0 %v1043, 112
  %v1115 = vpop.permute.xlu0 %1114
  %1116 = vrot.lane.b32.xlu0 %v1050, 112
  %v1117 = vpop.permute.xlu0 %1116
  %1118 = vrot.lane.b32.xlu0 %v1049, 112
  %v1119 = vpop.permute.xlu0 %1118
  %1120 = vrot.lane.b32.xlu0 %v1056, 112
  %v1121 = vpop.permute.xlu0 %1120
  %1122 = vrot.lane.b32.xlu0 %v1055, 112
  %v1123 = vpop.permute.xlu0 %1122
  %1124 = vrot.lane.b32.xlu0 %v1062, 112
  %v1125 = vpop.permute.xlu0 %1124
  %1126 = vrot.lane.b32.xlu0 %v1061, 112
  %v1127 = vpop.permute.xlu0 %1126
  %v1128 = vsel %vm259, %v1065, %v1067
  %v1129 = vsel %vm259, %v1069, %v1071
  %v1130 = vsel %vm259, %v1073, %v1075
  %v1131 = vsel %vm259, %v1077, %v1079
  %v1132 = vsel %vm259, %v1081, %v1083
  %v1133 = vsel %vm259, %v1085, %v1087
  %v1134 = vsel %vm259, %v1089, %v1091
  %v1135 = vsel %vm259, %v1093, %v1095
  %v1136 = vsel %vm259, %v1097, %v1099
  %v1137 = vsel %vm259, %v1101, %v1103
  %v1138 = vsel %vm259, %v1105, %v1107
  %v1139 = vsel %vm259, %v1109, %v1111
  %v1140 = vsel %vm259, %v1113, %v1115
  %v1141 = vsel %vm259, %v1117, %v1119
  %v1142 = vsel %vm259, %v1121, %v1123
  %v1143 = vsel %vm259, %v1125, %v1127
  %1160 = vmatpush.msra.mxu0 %v1062
  %1161 = vmatpush.msra.mxu0 %v1056
  %1162 = vmatpush.msra.mxu0 %v1050
  %1163 = vmatpush.msra.mxu0 %v1044
  %1164 = vmatpush.msra.mxu0 %v1038
  %1165 = vmatpush.msra.mxu0 %v1032
  %1166 = vmatpush.msra.mxu0 %v1026
  %1167 = vmatpush.msra.mxu0 %v1020
  %1168 = vmatpush.msra.mxu0 %v1014
  %1169 = vmatpush.msra.mxu0 %v1008
  %1170 = vmatpush.msra.mxu0 %v1002
  %1171 = vmatpush.msra.mxu0 %v996
  %1172 = vmatpush.msra.mxu0 %v990
  %1173 = vmatpush.msra.mxu0 %v984
  %1174 = vmatpush.msra.mxu0 %v978
  %1175 = vmatpush.msra.mxu0 %v970
  %1176 = vmatmul.f32.gmra.mxu0 %v41
  %v1177 = vpop.f32.mrf.mxu0
  %v1178 = vadd.f32 %v295, %v1177
  %1179 = vmatmul.f32.gmra.mxu0 %v43
  %v1180 = vpop.f32.mrf.mxu0
  %v1181 = vadd.f32 %v300, %v1180
  %1182 = vdwg.mxu0
  %1183 = vmatpush.msra.mxu0 %v1143
  %1184 = vmatpush.msra.mxu0 %v1142
  %1185 = vmatpush.msra.mxu0 %v1141
  %1186 = vmatpush.msra.mxu0 %v1140
  %1187 = vmatpush.msra.mxu0 %v1139
  %1188 = vmatpush.msra.mxu0 %v1138
  %1189 = vmatpush.msra.mxu0 %v1137
  %1190 = vmatpush.msra.mxu0 %v1136
  %1191 = vmatpush.msra.mxu0 %v1135
  %1192 = vmatpush.msra.mxu0 %v1134
  %1193 = vmatpush.msra.mxu0 %v1133
  %1194 = vmatpush.msra.mxu0 %v1132
  %1195 = vmatpush.msra.mxu0 %v1131
  %1196 = vmatpush.msra.mxu0 %v1130
  %1197 = vmatpush.msra.mxu0 %v1129
  %1198 = vmatpush.msra.mxu0 %v1128
  %1199 = vmatmul.f32.gmra.mxu0 %v42
  %v1200 = vpop.f32.mrf.mxu0
  %v1201 = vadd.f32 %v1178, %v1200
  %1202 = vmatmul.f32.gmra.mxu0 %v44
  %v1203 = vpop.f32.mrf.mxu0
  %v1204 = vadd.f32 %v1181, %v1203
  %1205 = vdwg.mxu0
  %vm1206 = vcmp.gt.f32.partialorder %v1201, 0.0
  %vm1207 = vcmp.gt.f32.partialorder %v1204, 0.0
  %v1208 = vmin.f32 %v1201, 0.0
  %v1209 = vmin.f32 %v1204, 0.0
  %v1210 = vmul.f32 %v1208, 1.442695
  %v1211 = vpow.pop %v1210
  %v1212 = vmul.f32 %v1209, 1.442695
  %v1213 = vpow.pop %v1212
  %v1214 = vsub.f32 %v1211, 1.0
  %v1215 = vsub.f32 %v1213, 1.0
  %v1216 = vsel %vm1206, %v1201, %v1214
  %v1217 = vsel %vm1207, %v1204, %v1215
  %1218 = vmatpush.msra.mxu0 %v64
  %1219 = vmatpush.msra.mxu0 %v63
  %1220 = vmatpush.msra.mxu0 %v62
  %1221 = vmatpush.msra.mxu0 %v61
  %1222 = vmatpush.msra.mxu0 %v60
  %1223 = vmatpush.msra.mxu0 %v59
  %1224 = vmatpush.msra.mxu0 %v58
  %1225 = vmatpush.msra.mxu0 %v57
  %1226 = vmatpush.msra.mxu0 %v56
  %1227 = vmatpush.msra.mxu0 %v55
  %1228 = vmatpush.msra.mxu0 %v54
  %1229 = vmatpush.msra.mxu0 %v53
  %1230 = vmatpush.msra.mxu0 %v52
  %1231 = vmatpush.msra.mxu0 %v51
  %1232 = vmatpush.msra.mxu0 %v50
  %1233 = vmatpush.msra.mxu0 %v49
  %1234 = vmatmul.f32.gmra.mxu0 %v1216
  %v1235 = vpop.f32.mrf.mxu0
  %v1236 = vadd.f32 0.0, %v1235
  %1237 = vmatmul.f32.gmra.mxu0 %v1217
  %v1238 = vpop.f32.mrf.mxu0
  %v1239 = vadd.f32 0.0, %v1238
  %1240 = vdwg.mxu0
  %1243 = vrot.lane.b32.xlu0 %v1236, 7
  %v1244 = vpop.permute.xlu0 %1243
  %1245 = vrot.lane.b32.xlu0 %v1239, 7
  %v1246 = vpop.permute.xlu0 %1245
  %v1249 = vsel %vm391, 0.0, %v1244
  %v1250 = vsel %vm391, 0.0, %v1246
  %v1251 = vsel %vm394, %v1249, 0.0
  %v1252 = vsel %vm394, %v1250, 0.0
  %1255 = vrot.lane.b32.xlu0 %v1251, 127
  %v1256 = vpop.permute.xlu0 %1255
  %1257 = vrot.lane.b32.xlu0 %v1252, 127
  %v1258 = vpop.permute.xlu0 %1257
  %1261 = vrot.lane.b32.xlu0 %v1251, 126
  %v1262 = vpop.permute.xlu0 %1261
  %1263 = vrot.lane.b32.xlu0 %v1252, 126
  %v1264 = vpop.permute.xlu0 %1263
  %1267 = vrot.lane.b32.xlu0 %v1251, 125
  %v1268 = vpop.permute.xlu0 %1267
  %1269 = vrot.lane.b32.xlu0 %v1252, 125
  %v1270 = vpop.permute.xlu0 %1269
  %1273 = vrot.lane.b32.xlu0 %v1251, 124
  %v1274 = vpop.permute.xlu0 %1273
  %1275 = vrot.lane.b32.xlu0 %v1252, 124
  %v1276 = vpop.permute.xlu0 %1275
  %1279 = vrot.lane.b32.xlu0 %v1251, 123
  %v1280 = vpop.permute.xlu0 %1279
  %1281 = vrot.lane.b32.xlu0 %v1252, 123
  %v1282 = vpop.permute.xlu0 %1281
  %1285 = vrot.lane.b32.xlu0 %v1251, 122
  %v1286 = vpop.permute.xlu0 %1285
  %1287 = vrot.lane.b32.xlu0 %v1252, 122
  %v1288 = vpop.permute.xlu0 %1287
  %1291 = vrot.lane.b32.xlu0 %v1251, 121
  %v1292 = vpop.permute.xlu0 %1291
  %1293 = vrot.lane.b32.xlu0 %v1252, 121
  %v1294 = vpop.permute.xlu0 %1293
  %1297 = vrot.lane.b32.xlu0 %v1251, 120
  %v1298 = vpop.permute.xlu0 %1297
  %1299 = vrot.lane.b32.xlu0 %v1252, 120
  %v1300 = vpop.permute.xlu0 %1299
  %1303 = vrot.lane.b32.xlu0 %v1251, 119
  %v1304 = vpop.permute.xlu0 %1303
  %1305 = vrot.lane.b32.xlu0 %v1252, 119
  %v1306 = vpop.permute.xlu0 %1305
  %1309 = vrot.lane.b32.xlu0 %v1251, 118
  %v1310 = vpop.permute.xlu0 %1309
  %1311 = vrot.lane.b32.xlu0 %v1252, 118
  %v1312 = vpop.permute.xlu0 %1311
  %1315 = vrot.lane.b32.xlu0 %v1251, 117
  %v1316 = vpop.permute.xlu0 %1315
  %1317 = vrot.lane.b32.xlu0 %v1252, 117
  %v1318 = vpop.permute.xlu0 %1317
  %1321 = vrot.lane.b32.xlu0 %v1251, 116
  %v1322 = vpop.permute.xlu0 %1321
  %1323 = vrot.lane.b32.xlu0 %v1252, 116
  %v1324 = vpop.permute.xlu0 %1323
  %1327 = vrot.lane.b32.xlu0 %v1251, 115
  %v1328 = vpop.permute.xlu0 %1327
  %1329 = vrot.lane.b32.xlu0 %v1252, 115
  %v1330 = vpop.permute.xlu0 %1329
  %1333 = vrot.lane.b32.xlu0 %v1251, 114
  %v1334 = vpop.permute.xlu0 %1333
  %1335 = vrot.lane.b32.xlu0 %v1252, 114
  %v1336 = vpop.permute.xlu0 %1335
  %1339 = vrot.lane.b32.xlu0 %v1251, 113
  %v1340 = vpop.permute.xlu0 %1339
  %1341 = vrot.lane.b32.xlu0 %v1252, 113
  %v1342 = vpop.permute.xlu0 %1341
  %1345 = vmatpush.msra.mxu0 %v1294
  %1346 = vmatpush.msra.mxu0 %v1292
  %1347 = vmatpush.msra.mxu0 %v1288
  %1348 = vmatpush.msra.mxu0 %v1286
  %1349 = vmatpush.msra.mxu0 %v1282
  %1350 = vmatpush.msra.mxu0 %v1280
  %1351 = vmatpush.msra.mxu0 %v1276
  %1352 = vmatpush.msra.mxu0 %v1274
  %1353 = vmatpush.msra.mxu0 %v1270
  %1354 = vmatpush.msra.mxu0 %v1268
  %1355 = vmatpush.msra.mxu0 %v1264
  %1356 = vmatpush.msra.mxu0 %v1262
  %1357 = vmatpush.msra.mxu0 %v1258
  %1358 = vmatpush.msra.mxu0 %v1256
  %1359 = vmatpush.msra.mxu0 %v1252
  %1360 = vmatpush.msra.mxu0 %v1251
  %1361 = vmatmul.f32.gmra.mxu0 %v45
  %v1362 = vpop.f32.mrf.mxu0
  %v1363 = vadd.f32 %v491, %v1362
  %1364 = vmatmul.f32.gmra.mxu0 %v47
  %v1365 = vpop.f32.mrf.mxu0
  %v1366 = vadd.f32 %v495, %v1365
  %1367 = vdwg.mxu0
  %1368 = vmatpush.msra.mxu0 %v1342
  %1369 = vmatpush.msra.mxu0 %v1340
  %1370 = vmatpush.msra.mxu0 %v1336
  %1371 = vmatpush.msra.mxu0 %v1334
  %1372 = vmatpush.msra.mxu0 %v1330
  %1373 = vmatpush.msra.mxu0 %v1328
  %1374 = vmatpush.msra.mxu0 %v1324
  %1375 = vmatpush.msra.mxu0 %v1322
  %1376 = vmatpush.msra.mxu0 %v1318
  %1377 = vmatpush.msra.mxu0 %v1316
  %1378 = vmatpush.msra.mxu0 %v1312
  %1379 = vmatpush.msra.mxu0 %v1310
  %1380 = vmatpush.msra.mxu0 %v1306
  %1381 = vmatpush.msra.mxu0 %v1304
  %1382 = vmatpush.msra.mxu0 %v1300
  %1383 = vmatpush.msra.mxu0 %v1298
  %1384 = vmatmul.f32.gmra.mxu0 %v46
  %v1385 = vpop.f32.mrf.mxu0
  %v1386 = vadd.f32 %v1363, %v1385
  %1387 = vmatmul.f32.gmra.mxu0 %v48
  %v1388 = vpop.f32.mrf.mxu0
  %v1389 = vadd.f32 %v1366, %v1388
  %1390 = vdwg.mxu0
  %vm1391 = vcmp.gt.f32.partialorder %v1386, 0.0
  %vm1392 = vcmp.gt.f32.partialorder %v1389, 0.0
  %v1393 = vmin.f32 %v1386, 0.0
  %v1394 = vmin.f32 %v1389, 0.0
  %v1395 = vmul.f32 %v1393, 1.442695
  %v1396 = vpow.pop %v1395
  %v1397 = vmul.f32 %v1394, 1.442695
  %v1398 = vpow.pop %v1397
  %v1399 = vsub.f32 %v1396, 1.0
  %v1400 = vsub.f32 %v1398, 1.0
  %v1401 = vsel %vm1391, %v1386, %v1399
  %v1402 = vsel %vm1392, %v1389, %v1400
  %v1404 = vsel %vm555, %v1401, 0
  %v1407 = vsel %vm555, %v1402, 0
  %1409 = vmatpush.msra.mxu0 0.0
  %1410 = vmatpush.msra.mxu0 0.0
  %1411 = vmatpush.msra.mxu0 0.0
  %1412 = vmatpush.msra.mxu0 0.0
  %1413 = vmatpush.msra.mxu0 0.0
  %1414 = vmatpush.msra.mxu0 0.0
  %1415 = vmatpush.msra.mxu0 0.0
  %1416 = vmatpush.msra.mxu0 0.0
  %1417 = vmatpush.msra.mxu0 0.0
  %1418 = vmatpush.msra.mxu0 0.0
  %1419 = vmatpush.msra.mxu0 0.0
  %1420 = vmatpush.msra.mxu0 0.0
  %1421 = vmatpush.msra.mxu0 0.0
  %1422 = vmatpush.msra.mxu0 0.0
  %1423 = vmatpush.msra.mxu0 %v66
  %1424 = vmatpush.msra.mxu0 %v65
  %1425 = vmatmul.f32.gmra.mxu0 %v1404
  %v1426 = vpop.f32.mrf.mxu0
  %v1427 = vadd.f32 0.0, %v1426
  %1428 = vmatmul.f32.gmra.mxu0 %v1407
  %v1429 = vpop.f32.mrf.mxu0
  %v1430 = vadd.f32 0.0, %v1429
  %1431 = vdwg.mxu0
  %1432 = vmatpush.msra.mxu0 0.0
  %1433 = vmatpush.msra.mxu0 0.0
  %1434 = vmatpush.msra.mxu0 0.0
  %1435 = vmatpush.msra.mxu0 0.0
  %1436 = vmatpush.msra.mxu0 0.0
  %1437 = vmatpush.msra.mxu0 0.0
  %1438 = vmatpush.msra.mxu0 0.0
  %1439 = vmatpush.msra.mxu0 0.0
  %1440 = vmatpush.msra.mxu0 0.0
  %1441 = vmatpush.msra.mxu0 0.0
  %1442 = vmatpush.msra.mxu0 0.0
  %1443 = vmatpush.msra.mxu0 0.0
  %1444 = vmatpush.msra.mxu0 0.0
  %1445 = vmatpush.msra.mxu0 0.0
  %1446 = vmatpush.msra.mxu0 %v1430
  %1447 = vmatpush.msra.mxu0 %v1427
  %1448 = vmatmul.f32.gmra.mxu0 %v594
  %v1449 = vpop.f32.mrf.mxu0
  %v1450 = vadd.f32 %v587, %v1449
  %1451 = vmatmul.f32.gmra.mxu0 %v597
  %v1452 = vpop.f32.mrf.mxu0
  %v1453 = vadd.f32 %v591, %v1452
  %1454 = vdwg.mxu0
  %1457 = vrot.lane.b32.xlu0 %v1427, 3
  %v1458 = vpop.permute.xlu0 %1457
  %1459 = vrot.lane.b32.xlu0 %v1430, 3
  %v1460 = vpop.permute.xlu0 %1459
  %v1463 = vsel %vm630, 0.0, %v1458
  %v1464 = vsel %vm630, 0.0, %v1460
  %1467 = vrot.lane.b32.xlu0 %v1463, 127
  %v1468 = vpop.permute.xlu0 %1467
  %1469 = vrot.lane.b32.xlu0 %v1464, 127
  %v1470 = vpop.permute.xlu0 %1469
  %1473 = vrot.lane.b32.xlu0 %v1463, 126
  %v1474 = vpop.permute.xlu0 %1473
  %1475 = vrot.lane.b32.xlu0 %v1464, 126
  %v1476 = vpop.permute.xlu0 %1475
  %1479 = vrot.lane.b32.xlu0 %v1463, 125
  %v1480 = vpop.permute.xlu0 %1479
  %1481 = vrot.lane.b32.xlu0 %v1464, 125
  %v1482 = vpop.permute.xlu0 %1481
  %1485 = vmatpush.msra.mxu0 0.0
  %1486 = vmatpush.msra.mxu0 0.0
  %1487 = vmatpush.msra.mxu0 0.0
  %1488 = vmatpush.msra.mxu0 0.0
  %1489 = vmatpush.msra.mxu0 0.0
  %1490 = vmatpush.msra.mxu0 0.0
  %1491 = vmatpush.msra.mxu0 0.0
  %1492 = vmatpush.msra.mxu0 0.0
  %1493 = vmatpush.msra.mxu0 %v1482
  %1494 = vmatpush.msra.mxu0 %v1480
  %1495 = vmatpush.msra.mxu0 %v1476
  %1496 = vmatpush.msra.mxu0 %v1474
  %1497 = vmatpush.msra.mxu0 %v1470
  %1498 = vmatpush.msra.mxu0 %v1468
  %1499 = vmatpush.msra.mxu0 %v1464
  %1500 = vmatpush.msra.mxu0 %v1463
  %1501 = vmatmul.f32.gmra.mxu0 %v663
  %v1502 = vpop.f32.mrf.mxu0
  %v1503 = vadd.f32 %v655, %v1502
  %1504 = vmatmul.f32.gmra.mxu0 %v666
  %v1505 = vpop.f32.mrf.mxu0
  %v1506 = vadd.f32 %v659, %v1505
  %1507 = vdwg.mxu0
  %v1508 = vmax.f32 %v1503, 0.0
  %v1509 = vmax.f32 %v1506, 0.0
  %1512 = vrot.lane.b32.xlu0 %v1508, 3
  %v1513 = vpop.permute.xlu0 %1512
  %1514 = vrot.lane.b32.xlu0 %v1509, 3
  %v1515 = vpop.permute.xlu0 %1514
  %v1518 = vsel %vm630, 0.0, %v1513
  %v1519 = vsel %vm630, 0.0, %v1515
  %v1522 = vrot.slane %v1518, 4
  %v1523 = vrot.slane %v1519, 4
  %v1524 = vsel %vm705, %v1522, %v1523
  %1525 = vrot.lane.b32.xlu0 %v1522, 127
  %v1526 = vpop.permute.xlu0 %1525
  %1527 = vrot.lane.b32.xlu0 %v1524, 127
  %v1528 = vpop.permute.xlu0 %1527
  %1531 = vrot.lane.b32.xlu0 %v1518, 126
  %v1532 = vpop.permute.xlu0 %1531
  %1533 = vrot.lane.b32.xlu0 %v1519, 126
  %v1534 = vpop.permute.xlu0 %1533
  %1537 = vrot.lane.b32.xlu0 %v1522, 125
  %v1538 = vpop.permute.xlu0 %1537
  %1539 = vrot.lane.b32.xlu0 %v1524, 125
  %v1540 = vpop.permute.xlu0 %1539
  %v1543 = vsel %vm705, %v1519, %v1526
  %v1544 = vsel %vm705, %v1534, %v1538
  %1545 = vmatpush.msra.mxu0 0.0
  %1546 = vmatpush.msra.mxu0 0.0
  %1547 = vmatpush.msra.mxu0 0.0
  %1548 = vmatpush.msra.mxu0 0.0
  %1549 = vmatpush.msra.mxu0 0.0
  %1550 = vmatpush.msra.mxu0 0.0
  %1551 = vmatpush.msra.mxu0 0.0
  %1552 = vmatpush.msra.mxu0 0.0
  %1553 = vmatpush.msra.mxu0 0.0
  %1554 = vmatpush.msra.mxu0 0.0
  %1555 = vmatpush.msra.mxu0 %v1540
  %1556 = vmatpush.msra.mxu0 %v1544
  %1557 = vmatpush.msra.mxu0 %v1532
  %1558 = vmatpush.msra.mxu0 %v1528
  %1559 = vmatpush.msra.mxu0 %v1543
  %1560 = vmatpush.msra.mxu0 %v1518
  %1561 = vmatmul.f32.gmra.mxu0 %v739
  %v1562 = vpop.f32.mrf.mxu0
  %v1563 = vadd.f32 %v731, %v1562
  %1564 = vmatmul.f32.gmra.mxu0 %v742
  %v1565 = vpop.f32.mrf.mxu0
  %v1566 = vadd.f32 %v735, %v1565
  %1567 = vdwg.mxu0
  %v1568 = vmax.f32 %v1563, 0.0
  %v1569 = vmax.f32 %v1566, 0.0
  %v1570 = vadd.f32 %v1568, %v1450
  %v1571 = vadd.f32 %v1569, %v1453
  %v1572 = vmax.f32 %v1570, 0.0
  %v1573 = vmax.f32 %v1571, 0.0
  %1576 = vrot.lane.b32.xlu0 %v1572, 6
  %v1577 = vpop.permute.xlu0 %1576
  %1578 = vrot.lane.b32.xlu0 %v1573, 6
  %v1579 = vpop.permute.xlu0 %1578
  %v1582 = vsel %vm781, 0.0, %v1577
  %v1583 = vsel %vm781, 0.0, %v1579
  %v1586 = vrot.slane %v1582, 4
  %v1587 = vrot.slane %v1583, 4
  %v1588 = vsel %vm705, %v1586, %v1587
  %1589 = vrot.lane.b32.xlu0 %v1586, 126
  %v1590 = vpop.permute.xlu0 %1589
  %1591 = vrot.lane.b32.xlu0 %v1588, 126
  %v1592 = vpop.permute.xlu0 %1591
  %1595 = vrot.lane.b32.xlu0 %v1582, 124
  %v1596 = vpop.permute.xlu0 %1595
  %1597 = vrot.lane.b32.xlu0 %v1583, 124
  %v1598 = vpop.permute.xlu0 %1597
  %1601 = vrot.lane.b32.xlu0 %v1586, 122
  %v1602 = vpop.permute.xlu0 %1601
  %1603 = vrot.lane.b32.xlu0 %v1588, 122
  %v1604 = vpop.permute.xlu0 %1603
  %v1607 = vsel %vm705, %v1583, %v1590
  %v1608 = vsel %vm705, %v1598, %v1602
  %1609 = vmatpush.msra.mxu0 0.0
  %1610 = vmatpush.msra.mxu0 0.0
  %1611 = vmatpush.msra.mxu0 0.0
  %1612 = vmatpush.msra.mxu0 0.0
  %1613 = vmatpush.msra.mxu0 0.0
  %1614 = vmatpush.msra.mxu0 0.0
  %1615 = vmatpush.msra.mxu0 0.0
  %1616 = vmatpush.msra.mxu0 0.0
  %1617 = vmatpush.msra.mxu0 0.0
  %1618 = vmatpush.msra.mxu0 0.0
  %1619 = vmatpush.msra.mxu0 %v1604
  %1620 = vmatpush.msra.mxu0 %v1608
  %1621 = vmatpush.msra.mxu0 %v1596
  %1622 = vmatpush.msra.mxu0 %v1592
  %1623 = vmatpush.msra.mxu0 %v1607
  %1624 = vmatpush.msra.mxu0 %v1582
  %1625 = vmatmul.f32.gmra.mxu0 %v818
  %v1626 = vpop.f32.mrf.mxu0
  %v1627 = vadd.f32 %v811, %v1626
  %1628 = vmatmul.f32.gmra.mxu0 %v821
  %v1629 = vpop.f32.mrf.mxu0
  %v1630 = vadd.f32 %v815, %v1629
  %1631 = vdwg.mxu0
  %v1632 = vmax.f32 %v1627, 0.0
  %v1633 = vmax.f32 %v1630, 0.0
  %1636 = vrot.lane.b32.xlu0 %v1632, 6
  %v1637 = vpop.permute.xlu0 %1636
  %1638 = vrot.lane.b32.xlu0 %v1633, 6
  %v1639 = vpop.permute.xlu0 %1638
  %v1642 = vsel %vm781, 0.0, %v1637
  %v1643 = vsel %vm781, 0.0, %v1639
  %v1646 = vrot.slane %v1642, 4
  %v1647 = vrot.slane %v1643, 4
  %v1648 = vsel %vm705, %v1646, %v1647
  %1649 = vrot.lane.b32.xlu0 %v1646, 126
  %v1650 = vpop.permute.xlu0 %1649
  %1651 = vrot.lane.b32.xlu0 %v1648, 126
  %v1652 = vpop.permute.xlu0 %1651
  %1655 = vrot.lane.b32.xlu0 %v1642, 124
  %v1656 = vpop.permute.xlu0 %1655
  %1657 = vrot.lane.b32.xlu0 %v1643, 124
  %v1658 = vpop.permute.xlu0 %1657
  %1661 = vrot.lane.b32.xlu0 %v1646, 122
  %v1662 = vpop.permute.xlu0 %1661
  %1663 = vrot.lane.b32.xlu0 %v1648, 122
  %v1664 = vpop.permute.xlu0 %1663
  %v1667 = vsel %vm705, %v1643, %v1650
  %v1668 = vsel %vm705, %v1658, %v1662
  %1669 = vmatpush.msra.mxu0 0.0
  %1670 = vmatpush.msra.mxu0 0.0
  %1671 = vmatpush.msra.mxu0 0.0
  %1672 = vmatpush.msra.mxu0 0.0
  %1673 = vmatpush.msra.mxu0 0.0
  %1674 = vmatpush.msra.mxu0 0.0
  %1675 = vmatpush.msra.mxu0 0.0
  %1676 = vmatpush.msra.mxu0 0.0
  %1677 = vmatpush.msra.mxu0 0.0
  %1678 = vmatpush.msra.mxu0 0.0
  %1679 = vmatpush.msra.mxu0 %v1664
  %1680 = vmatpush.msra.mxu0 %v1668
  %1681 = vmatpush.msra.mxu0 %v1656
  %1682 = vmatpush.msra.mxu0 %v1652
  %1683 = vmatpush.msra.mxu0 %v1667
  %1684 = vmatpush.msra.mxu0 %v1642
  %1685 = vmatmul.f32.gmra.mxu0 %v892
  %v1686 = vpop.f32.mrf.mxu0
  %v1687 = vadd.f32 %v885, %v1686
  %1688 = vmatmul.f32.gmra.mxu0 %v895
  %v1689 = vpop.f32.mrf.mxu0
  %v1690 = vadd.f32 %v889, %v1689
  %1691 = vdwg.mxu0
  %v1692 = vmax.f32 %v1687, 0.0
  %v1693 = vmax.f32 %v1690, 0.0
  %v1694 = vadd.f32 %v1692, %v1572
  %v1695 = vadd.f32 %v1693, %v1573
  %v1696 = vmax.f32 %v1694, 0.0
  %v1697 = vmax.f32 %v1695, 0.0
  %1700 = vrot.lane.b32.xlu0 %v1696, 127
  %v1701 = vpop.permute.xlu0 %1700
  %1702 = vrot.lane.b32.xlu0 %v1697, 127
  %v1703 = vpop.permute.xlu0 %1702
  %v1705 = vsel %vm705, %v1703, 0
  %1707 = vmatpush.msra.mxu0 0.0
  %1708 = vmatpush.msra.mxu0 0.0
  %1709 = vmatpush.msra.mxu0 0.0
  %1710 = vmatpush.msra.mxu0 0.0
  %1711 = vmatpush.msra.mxu0 0.0
  %1712 = vmatpush.msra.mxu0 0.0
  %1713 = vmatpush.msra.mxu0 0.0
  %1714 = vmatpush.msra.mxu0 0.0
  %1715 = vmatpush.msra.mxu0 0.0
  %1716 = vmatpush.msra.mxu0 0.0
  %1717 = vmatpush.msra.mxu0 0.0
  %1718 = vmatpush.msra.mxu0 0.0
  %1719 = vmatpush.msra.mxu0 0.0
  %1720 = vmatpush.msra.mxu0 0.0
  %1721 = vmatpush.msra.mxu0 %v1705
  %1722 = vmatpush.msra.mxu0 %v1701
  %1723 = vmatmul.f32.gmra.mxu0 %v938
  %v1724 = vpop.f32.mrf.mxu0
  %v1725 = vadd.f32 %v934, %v1724
  %1726 = vdwg.mxu0
  %1728 = vrot.lane.b32.xlu0 %v1725, 1
  %v1729 = vpop.permute.xlu0 %1728
  %vm1731 = vcmask 11272
  %1732 = vst.msk [vmem:[%s12] sm:$0xf] %vm1731, %v1729
  // Predicated region
  $region50: #{tpu_custom_call.1} parent=0 // pred_check
    _
  $region51: #{tpu_custom_call.1} parent=0 // pred_check_branch
    %1734 = sbr.rel (0) target = $region53
  $region52: #{tpu_custom_call.1} parent=0 // pred_region
    _
  $region53: #{tpu_custom_call.1} parent=0 // pred_fallthru
    _
  // Predicated region
  $region54: #{tpu_custom_call.1} parent=0 // pred_check
    _
  $region55: #{tpu_custom_call.1} parent=0 // pred_check_branch
    %1736 = sbr.rel (0) target = $region57
  $region56: #{tpu_custom_call.1} parent=0 // pred_region
    _
  $region57: #{tpu_custom_call.1} parent=0 // pred_fallthru
    _

</llo_original>
